<compile_context>
chip_gen: v6e
topology: v6e:2x2x1
jax: 0.10.0
libtpu: 0.0.40
codegen_flags: <defaults>
</compile_context>

<pallas_src>
import functools

import jax
import jax.numpy as jnp
from jax import lax
from jax.experimental import pallas as pl
from jax.experimental.pallas import tpu as pltpu


# ----------------------------------------------------------------------------
# Pallas kernel
# ----------------------------------------------------------------------------
def _pwl_kernel(xr_ref, xi_ref, bp_ref, ds_ref, p0_ref, or_ref, oi_ref,
                *, chunk_rows, n_groups):
    """Channel-wise piecewise-linear function (ReLU decomposition).

    xr_ref/xi_ref : (TM, C)  real / imag input rows, channels on the lane axis
    bp_ref        : (Bp, C)  sorted breakpoints per channel (rows >= B padded w/ 0)
    ds_ref        : (Bp, C)  slope deltas s[i+1]-s[i]        (rows >= B padded w/ 0)
    p0_ref        : (8, C)   row0 = first breakpoint, row1 = leftmost slope, row2 = bias
    or_ref/oi_ref : (TM, C)  real / imag output rows
    """
    bp0 = p0_ref[0:1, :]                 # (1, C) broadcast operands
    s0 = p0_ref[1:2, :]
    bias = p0_ref[2:3, :]

    def pwl(x):                          # x: (chunk_rows, C) f32
        acc = bias + s0 * (x - bp0)

        def tap_group(j, acc):
            base = pl.multiple_of(j * 8, 8)
            bp8 = bp_ref[pl.ds(base, 8), :]      # one param vreg
            ds8 = ds_ref[pl.ds(base, 8), :]      # one param vreg
            # 8 statically-unrolled taps; the (1, C) rows stay single-vreg
            # broadcast operands of the sub/mul (never materialized tiles).
            for t in range(8):
                acc = acc + ds8[t:t + 1, :] * jnp.maximum(x - bp8[t:t + 1, :], 0.0)
            return acc

        return lax.fori_loop(0, n_groups, tap_group, acc)

    def do_chunk(row0):
        or_ref[pl.ds(row0, chunk_rows), :] = pwl(
            xr_ref[pl.ds(row0, chunk_rows), :]).astype(or_ref.dtype)
        oi_ref[pl.ds(row0, chunk_rows), :] = pwl(
            xi_ref[pl.ds(row0, chunk_rows), :]).astype(oi_ref.dtype)

    n_chunks = xr_ref.shape[0] // chunk_rows
    if n_chunks == 1:
        do_chunk(0)
    else:
        # fori_loop (not a Python unroll) bounds the live vreg set per chunk.
        def row_chunk(c, carry):
            do_chunk(pl.multiple_of(c * chunk_rows, chunk_rows))
            return carry

        lax.fori_loop(0, n_chunks, row_chunk, 0)


def _ceil_div(a, b):
    return -(-a // b)


def _choose_block_rows(M, *, chunk=128, max_block=1024):
    """Largest row block <= max_block that still leaves >= 2 grid steps (so both
    v7x TensorCores get work) and divides evenly into the inner row chunks."""
    grid = max(2, _ceil_div(M, max_block))
    br = _ceil_div(M, grid)
    if br >= chunk:
        br = _ceil_div(br, chunk) * chunk        # uniform 128-row inner chunks
    else:
        br = _ceil_div(br, 8) * 8                # (8, 128) tiling floor
    return max(8, min(br, max_block))


def _pwl_pallas(xr, xi, bp_t, ds_t, p0):
    """Apply the channel-wise PWL to xr, xi of shape (M, C), channels on lanes."""
    M, C = xr.shape
    Bp = bp_t.shape[0]
    block_rows = _choose_block_rows(M)
    chunk_rows = min(128, block_rows)
    Mp = _ceil_div(M, block_rows) * block_rows
    if Mp != M:
        pad = ((0, Mp - M), (0, 0))
        xr = jnp.pad(xr, pad)
        xi = jnp.pad(xi, pad)

    row_spec = pl.BlockSpec((block_rows, C), lambda i: (i, 0))

    yr, yi = pl.pallas_call(
        functools.partial(_pwl_kernel, chunk_rows=chunk_rows, n_groups=Bp // 8),
        out_shape=(jax.ShapeDtypeStruct((Mp, C), jnp.float32),
                   jax.ShapeDtypeStruct((Mp, C), jnp.float32)),
        grid_spec=pltpu.PrefetchScalarGridSpec(
            num_scalar_prefetch=0,
            grid=(Mp // block_rows,),
            in_specs=[
                row_spec,                                      # real rows
                row_spec,                                      # imag rows
                pl.BlockSpec((Bp, C), lambda i: (0, 0)),       # breakpoints (resident)
                pl.BlockSpec((Bp, C), lambda i: (0, 0)),       # slope deltas (resident)
                pl.BlockSpec((8, C), lambda i: (0, 0)),        # bp0 / s0 / bias
            ],
            out_specs=[row_spec, row_spec],
        ),
        compiler_params=pltpu.CompilerParams(
            dimension_semantics=("parallel",)),
    )(xr, xi, bp_t, ds_t, p0)
    return yr[:M], yi[:M]


@jax.jit
def _nonlinear_forward(z, bp_t, ds_t, p0):
    """z: (N, C, H, W) complex64 -> (N, C, H, W) complex64 via channel-wise PWL."""
    N, C, H, W = z.shape
    # Real & imaginary parts share the same PWL parameters: ONE pallas_call processes
    # both as separate lane-dense (N*H*W, C) inputs/outputs (no jnp.stack round-trip).
    zr = jnp.transpose(jnp.real(z), (0, 2, 3, 1)).reshape(-1, C).astype(jnp.float32)
    zi = jnp.transpose(jnp.imag(z), (0, 2, 3, 1)).reshape(-1, C).astype(jnp.float32)

    yr, yi = _pwl_pallas(zr, zi, bp_t, ds_t, p0)

    yr = jnp.transpose(yr.reshape(N, H, W, C), (0, 3, 1, 2))
    yi = jnp.transpose(yi.reshape(N, H, W, C), (0, 3, 1, 2))
    return jax.lax.complex(yr, yi)


# ----------------------------------------------------------------------------
# Layer wrapper (JAX/Pallas port of the PyTorch NonlinearLayer)
# ----------------------------------------------------------------------------
class NonlinearLayer:
    def __init__(self, key, num_channels=128, num_breakpoints=101):
        self.num_channels = num_channels
        self.num_breakpoints = num_breakpoints
        kx, ks, kb = jax.random.split(key, 3)
        # torchpwl.PWL's default init is a near-identity curve (x_positions ~ N(0,1e-6),
        # slopes = 1).  Random parameters are used here so the test exercises a
        # non-trivial curve; the forward semantics are identical for any values.
        self.x_positions = jax.random.normal(
            kx, (num_channels, num_breakpoints), jnp.float32)          # (C, B)
        self.slopes = 0.5 * jax.random.normal(
            ks, (num_channels, num_breakpoints + 1), jnp.float32)      # (C, B+1)
        self.biases = jax.random.normal(kb, (num_channels,), jnp.float32)  # (C,)

        # Kernel-side parameterization: channels on the lane axis, breakpoint rows
        # padded to a multiple of 8 (padded slope-deltas are 0 => padded taps no-op).
        bp = jnp.sort(self.x_positions, axis=1)                        # (C, B) sorted
        ds = self.slopes[:, 1:] - self.slopes[:, :-1]                  # (C, B)
        bpad = ((num_breakpoints + 7) // 8) * 8 - num_breakpoints
        self._bp_t = jnp.pad(bp.T, ((0, bpad), (0, 0)))                # (Bp, C)
        self._ds_t = jnp.pad(ds.T, ((0, bpad), (0, 0)))                # (Bp, C)
        p0 = jnp.stack([bp[:, 0], self.slopes[:, 0], self.biases])     # (3, C)
        self._p0 = jnp.pad(p0, ((0, 5), (0, 0)))                       # (8, C)

    def __call__(self, x):
        z = x["conv1_output"]                                          # complex64 NCHW
        x["nonlinear_output"] = _nonlinear_forward(z, self._bp_t, self._ds_t, self._p0)
        return x


# ----------------------------------------------------------------------------
# Pure-JAX reference: exact replica of torchpwl.PWL.forward (gather formulation)
# ----------------------------------------------------------------------------
def _pwl_torch_ref(x_nchw, x_positions, slopes, biases):
    N, C, H, W = x_nchw.shape
    xf = jnp.transpose(x_nchw, (0, 2, 3, 1)).reshape(-1, C)            # (M, C)
    bp = jnp.sort(x_positions, axis=1)                                 # (C, B)
    B = bp.shape[1]
    skip_deltas = (bp[:, 1:] - bp[:, :-1]) * slopes[:, 1:B]            # (C, B-1)
    cums = jnp.cumsum(skip_deltas, axis=1)                             # (C, B-1)
    betas = jnp.concatenate(
        [jnp.zeros((C, 2), xf.dtype), cums], axis=1) + biases[:, None]  # (C, B+1)
    anchors = jnp.concatenate([bp[:, :1], bp], axis=1)                 # (C, B+1)
    # segment id = number of breakpoints <= x  (0 .. B)
    seg = jnp.sum((xf[:, :, None] >= bp[None, :, :]).astype(jnp.int32), axis=-1)
    onehot = jax.nn.one_hot(seg, B + 1, dtype=xf.dtype)                # (M, C, B+1)
    sel_beta = jnp.einsum("mcb,cb->mc", onehot, betas)
    sel_anchor = jnp.einsum("mcb,cb->mc", onehot, anchors)
    sel_slope = jnp.einsum("mcb,cb->mc", onehot, slopes)
    yf = sel_beta + (xf - sel_anchor) * sel_slope
    return jnp.transpose(yf.reshape(N, H, W, C), (0, 3, 1, 2))


if __name__ == "__main__":
    key = jax.random.PRNGKey(0)
    k_param, k_re, k_im = jax.random.split(key, 3)

    N, C, H, W = 2, 128, 8, 8                # PWL is fixed at 128 channels by the module
    layer = NonlinearLayer(k_param, num_channels=C, num_breakpoints=101)

    zr = jax.random.normal(k_re, (N, C, H, W), jnp.float32)
    zi = jax.random.normal(k_im, (N, C, H, W), jnp.float32)
    x = {"conv1_output": jax.lax.complex(zr, zi)}

    out = layer(x)
    result = jax.block_until_ready(out["nonlinear_output"])

    # Cross-check against the torchpwl gather-based formulation (mathematically
    # identical; summation order differs slightly -> small fp tolerance).
    ref_r = _pwl_torch_ref(zr, layer.x_positions, layer.slopes, layer.biases)
    ref_i = _pwl_torch_ref(zi, layer.x_positions, layer.slopes, layer.biases)

    assert result.shape == (N, C, H, W)
    assert result.dtype == jnp.complex64
    assert jnp.allclose(jnp.real(result), ref_r, rtol=2e-3, atol=2e-3)
    assert jnp.allclose(jnp.imag(result), ref_i, rtol=2e-3, atol=2e-3)

    print("KERNEL_OK")
</pallas_src>

<mosaic_0001>
module attributes {stable_mosaic.version = 11 : i64} {
  func.func @_pwl_kernel(%arg0: i32, %arg1: memref<64x128xf32, #tpu.memory_space<vmem>>, %arg2: memref<64x128xf32, #tpu.memory_space<vmem>>, %arg3: memref<104x128xf32, #tpu.memory_space<vmem>>, %arg4: memref<104x128xf32, #tpu.memory_space<vmem>>, %arg5: memref<8x128xf32, #tpu.memory_space<vmem>>, %arg6: memref<64x128xf32, #tpu.memory_space<vmem>>, %arg7: memref<64x128xf32, #tpu.memory_space<vmem>>) attributes {dimension_semantics = [#tpu.dimension_semantics<parallel>], iteration_bounds = array<i64: 2>, scalar_prefetch = 0 : i64, scratch_operands = 0 : i64, tpu.core_type = #tpu.core_type<tc>, window_params = [{transform_indices = @transform_0, window_bounds = array<i64: 64, 128>}, {transform_indices = @transform_1, window_bounds = array<i64: 64, 128>}, {pipeline_mode = #tpu.pipeline_mode<synchronous>, transform_indices = @transform_2, window_bounds = array<i64: 104, 128>}, {pipeline_mode = #tpu.pipeline_mode<synchronous>, transform_indices = @transform_3, window_bounds = array<i64: 104, 128>}, {pipeline_mode = #tpu.pipeline_mode<synchronous>, transform_indices = @transform_4, window_bounds = array<i64: 8, 128>}, {transform_indices = @transform_5, window_bounds = array<i64: 64, 128>}, {transform_indices = @transform_6, window_bounds = array<i64: 64, 128>}]} {
    %c0 = arith.constant 0 : index
    %c0_0 = arith.constant 0 : index
    %0 = vector.load %arg5[%c0, %c0_0] : memref<8x128xf32, #tpu.memory_space<vmem>>, vector<1x128xf32>
    %c1 = arith.constant 1 : index
    %c0_1 = arith.constant 0 : index
    %1 = vector.load %arg5[%c1, %c0_1] : memref<8x128xf32, #tpu.memory_space<vmem>>, vector<1x128xf32>
    %c2 = arith.constant 2 : index
    %c0_2 = arith.constant 0 : index
    %2 = vector.load %arg5[%c2, %c0_2] : memref<8x128xf32, #tpu.memory_space<vmem>>, vector<1x128xf32>
    %c0_3 = arith.constant 0 : index
    %c0_4 = arith.constant 0 : index
    %3 = vector.load %arg1[%c0_3, %c0_4] : memref<64x128xf32, #tpu.memory_space<vmem>>, vector<64x128xf32>
    %4 = vector.broadcast %0 : vector<1x128xf32> to vector<64x128xf32>
    %5 = arith.subf %3, %4 : vector<64x128xf32>
    %6 = vector.broadcast %1 : vector<1x128xf32> to vector<64x128xf32>
    %7 = arith.mulf %6, %5 : vector<64x128xf32>
    %8 = vector.broadcast %2 : vector<1x128xf32> to vector<64x128xf32>
    %9 = arith.addf %8, %7 : vector<64x128xf32>
    %c0_i32 = arith.constant 0 : i32
    %c13_i32 = arith.constant 13 : i32
    %10 = arith.addi %c0_i32, %c13_i32 : i32
    %c1_i32 = arith.constant 1 : i32
    %11 = scf.for %arg8 = %c0_i32 to %10 step %c1_i32 iter_args(%arg9 = %9) -> (vector<64x128xf32>)  : i32 {
      %c8_i32 = arith.constant 8 : i32
      %23 = arith.muli %arg8, %c8_i32 : i32
      %24 = tpu.assume_multiple %23, 8 : i32
      %25 = arith.index_cast %24 : i32 to index
      %c0_16 = arith.constant 0 : index
      %26 = vector.load %arg3[%25, %c0_16] : memref<104x128xf32, #tpu.memory_space<vmem>>, vector<8x128xf32>
      %27 = arith.index_cast %24 : i32 to index
      %c0_17 = arith.constant 0 : index
      %28 = vector.load %arg4[%27, %c0_17] : memref<104x128xf32, #tpu.memory_space<vmem>>, vector<8x128xf32>
      %29 = vector.extract_strided_slice %28 {offsets = [0, 0], sizes = [1, 128], strides = [1, 1]} : vector<8x128xf32> to vector<1x128xf32>
      %30 = vector.extract_strided_slice %26 {offsets = [0, 0], sizes = [1, 128], strides = [1, 1]} : vector<8x128xf32> to vector<1x128xf32>
      %31 = vector.broadcast %30 : vector<1x128xf32> to vector<64x128xf32>
      %32 = arith.subf %3, %31 : vector<64x128xf32>
      %cst = arith.constant 0.000000e+00 : f32
      %33 = vector.broadcast %cst : f32 to vector<64x128xf32>
      %34 = arith.maximumf %32, %33 : vector<64x128xf32>
      %35 = vector.broadcast %29 : vector<1x128xf32> to vector<64x128xf32>
      %36 = arith.mulf %35, %34 : vector<64x128xf32>
      %37 = arith.addf %arg9, %36 : vector<64x128xf32>
      %38 = vector.extract_strided_slice %28 {offsets = [1, 0], sizes = [1, 128], strides = [1, 1]} : vector<8x128xf32> to vector<1x128xf32>
      %39 = vector.extract_strided_slice %26 {offsets = [1, 0], sizes = [1, 128], strides = [1, 1]} : vector<8x128xf32> to vector<1x128xf32>
      %40 = vector.broadcast %39 : vector<1x128xf32> to vector<64x128xf32>
      %41 = arith.subf %3, %40 : vector<64x128xf32>
      %cst_18 = arith.constant 0.000000e+00 : f32
      %42 = vector.broadcast %cst_18 : f32 to vector<64x128xf32>
      %43 = arith.maximumf %41, %42 : vector<64x128xf32>
      %44 = vector.broadcast %38 : vector<1x128xf32> to vector<64x128xf32>
      %45 = arith.mulf %44, %43 : vector<64x128xf32>
      %46 = arith.addf %37, %45 : vector<64x128xf32>
      %47 = vector.extract_strided_slice %28 {offsets = [2, 0], sizes = [1, 128], strides = [1, 1]} : vector<8x128xf32> to vector<1x128xf32>
      %48 = vector.extract_strided_slice %26 {offsets = [2, 0], sizes = [1, 128], strides = [1, 1]} : vector<8x128xf32> to vector<1x128xf32>
      %49 = vector.broadcast %48 : vector<1x128xf32> to vector<64x128xf32>
      %50 = arith.subf %3, %49 : vector<64x128xf32>
      %cst_19 = arith.constant 0.000000e+00 : f32
      %51 = vector.broadcast %cst_19 : f32 to vector<64x128xf32>
      %52 = arith.maximumf %50, %51 : vector<64x128xf32>
      %53 = vector.broadcast %47 : vector<1x128xf32> to vector<64x128xf32>
      %54 = arith.mulf %53, %52 : vector<64x128xf32>
      %55 = arith.addf %46, %54 : vector<64x128xf32>
      %56 = vector.extract_strided_slice %28 {offsets = [3, 0], sizes = [1, 128], strides = [1, 1]} : vector<8x128xf32> to vector<1x128xf32>
      %57 = vector.extract_strided_slice %26 {offsets = [3, 0], sizes = [1, 128], strides = [1, 1]} : vector<8x128xf32> to vector<1x128xf32>
      %58 = vector.broadcast %57 : vector<1x128xf32> to vector<64x128xf32>
      %59 = arith.subf %3, %58 : vector<64x128xf32>
      %cst_20 = arith.constant 0.000000e+00 : f32
      %60 = vector.broadcast %cst_20 : f32 to vector<64x128xf32>
      %61 = arith.maximumf %59, %60 : vector<64x128xf32>
      %62 = vector.broadcast %56 : vector<1x128xf32> to vector<64x128xf32>
      %63 = arith.mulf %62, %61 : vector<64x128xf32>
      %64 = arith.addf %55, %63 : vector<64x128xf32>
      %65 = vector.extract_strided_slice %28 {offsets = [4, 0], sizes = [1, 128], strides = [1, 1]} : vector<8x128xf32> to vector<1x128xf32>
      %66 = vector.extract_strided_slice %26 {offsets = [4, 0], sizes = [1, 128], strides = [1, 1]} : vector<8x128xf32> to vector<1x128xf32>
      %67 = vector.broadcast %66 : vector<1x128xf32> to vector<64x128xf32>
      %68 = arith.subf %3, %67 : vector<64x128xf32>
      %cst_21 = arith.constant 0.000000e+00 : f32
      %69 = vector.broadcast %cst_21 : f32 to vector<64x128xf32>
      %70 = arith.maximumf %68, %69 : vector<64x128xf32>
      %71 = vector.broadcast %65 : vector<1x128xf32> to vector<64x128xf32>
      %72 = arith.mulf %71, %70 : vector<64x128xf32>
      %73 = arith.addf %64, %72 : vector<64x128xf32>
      %74 = vector.extract_strided_slice %28 {offsets = [5, 0], sizes = [1, 128], strides = [1, 1]} : vector<8x128xf32> to vector<1x128xf32>
      %75 = vector.extract_strided_slice %26 {offsets = [5, 0], sizes = [1, 128], strides = [1, 1]} : vector<8x128xf32> to vector<1x128xf32>
      %76 = vector.broadcast %75 : vector<1x128xf32> to vector<64x128xf32>
      %77 = arith.subf %3, %76 : vector<64x128xf32>
      %cst_22 = arith.constant 0.000000e+00 : f32
      %78 = vector.broadcast %cst_22 : f32 to vector<64x128xf32>
      %79 = arith.maximumf %77, %78 : vector<64x128xf32>
      %80 = vector.broadcast %74 : vector<1x128xf32> to vector<64x128xf32>
      %81 = arith.mulf %80, %79 : vector<64x128xf32>
      %82 = arith.addf %73, %81 : vector<64x128xf32>
      %83 = vector.extract_strided_slice %28 {offsets = [6, 0], sizes = [1, 128], strides = [1, 1]} : vector<8x128xf32> to vector<1x128xf32>
      %84 = vector.extract_strided_slice %26 {offsets = [6, 0], sizes = [1, 128], strides = [1, 1]} : vector<8x128xf32> to vector<1x128xf32>
      %85 = vector.broadcast %84 : vector<1x128xf32> to vector<64x128xf32>
      %86 = arith.subf %3, %85 : vector<64x128xf32>
      %cst_23 = arith.constant 0.000000e+00 : f32
      %87 = vector.broadcast %cst_23 : f32 to vector<64x128xf32>
      %88 = arith.maximumf %86, %87 : vector<64x128xf32>
      %89 = vector.broadcast %83 : vector<1x128xf32> to vector<64x128xf32>
      %90 = arith.mulf %89, %88 : vector<64x128xf32>
      %91 = arith.addf %82, %90 : vector<64x128xf32>
      %92 = vector.extract_strided_slice %28 {offsets = [7, 0], sizes = [1, 128], strides = [1, 1]} : vector<8x128xf32> to vector<1x128xf32>
      %93 = vector.extract_strided_slice %26 {offsets = [7, 0], sizes = [1, 128], strides = [1, 1]} : vector<8x128xf32> to vector<1x128xf32>
      %94 = vector.broadcast %93 : vector<1x128xf32> to vector<64x128xf32>
      %95 = arith.subf %3, %94 : vector<64x128xf32>
      %cst_24 = arith.constant 0.000000e+00 : f32
      %96 = vector.broadcast %cst_24 : f32 to vector<64x128xf32>
      %97 = arith.maximumf %95, %96 : vector<64x128xf32>
      %98 = vector.broadcast %92 : vector<1x128xf32> to vector<64x128xf32>
      %99 = arith.mulf %98, %97 : vector<64x128xf32>
      %100 = arith.addf %91, %99 : vector<64x128xf32>
      scf.yield %100 : vector<64x128xf32>
    }
    %c13_i32_5 = arith.constant 13 : i32
    %c0_6 = arith.constant 0 : index
    %c0_7 = arith.constant 0 : index
    %12 = vector.load %arg6[%c0_6, %c0_7] : memref<64x128xf32, #tpu.memory_space<vmem>>, vector<64x128xf32>
    tpu.vector_store %arg6[%c0_6, %c0_7], %11 {strides = array<i32>} : memref<64x128xf32, #tpu.memory_space<vmem>>, vector<64x128xf32>,
    %c0_8 = arith.constant 0 : index
    %c0_9 = arith.constant 0 : index
    %13 = vector.load %arg2[%c0_8, %c0_9] : memref<64x128xf32, #tpu.memory_space<vmem>>, vector<64x128xf32>
    %14 = vector.broadcast %0 : vector<1x128xf32> to vector<64x128xf32>
    %15 = arith.subf %13, %14 : vector<64x128xf32>
    %16 = vector.broadcast %1 : vector<1x128xf32> to vector<64x128xf32>
    %17 = arith.mulf %16, %15 : vector<64x128xf32>
    %18 = vector.broadcast %2 : vector<1x128xf32> to vector<64x128xf32>
    %19 = arith.addf %18, %17 : vector<64x128xf32>
    %c0_i32_10 = arith.constant 0 : i32
    %c13_i32_11 = arith.constant 13 : i32
    %20 = arith.addi %c0_i32_10, %c13_i32_11 : i32
    %c1_i32_12 = arith.constant 1 : i32
    %21 = scf.for %arg8 = %c0_i32_10 to %20 step %c1_i32_12 iter_args(%arg9 = %19) -> (vector<64x128xf32>)  : i32 {
      %c8_i32 = arith.constant 8 : i32
      %23 = arith.muli %arg8, %c8_i32 : i32
      %24 = tpu.assume_multiple %23, 8 : i32
      %25 = arith.index_cast %24 : i32 to index
      %c0_16 = arith.constant 0 : index
      %26 = vector.load %arg3[%25, %c0_16] : memref<104x128xf32, #tpu.memory_space<vmem>>, vector<8x128xf32>
      %27 = arith.index_cast %24 : i32 to index
      %c0_17 = arith.constant 0 : index
      %28 = vector.load %arg4[%27, %c0_17] : memref<104x128xf32, #tpu.memory_space<vmem>>, vector<8x128xf32>
      %29 = vector.extract_strided_slice %28 {offsets = [0, 0], sizes = [1, 128], strides = [1, 1]} : vector<8x128xf32> to vector<1x128xf32>
      %30 = vector.extract_strided_slice %26 {offsets = [0, 0], sizes = [1, 128], strides = [1, 1]} : vector<8x128xf32> to vector<1x128xf32>
      %31 = vector.broadcast %30 : vector<1x128xf32> to vector<64x128xf32>
      %32 = arith.subf %13, %31 : vector<64x128xf32>
      %cst = arith.constant 0.000000e+00 : f32
      %33 = vector.broadcast %cst : f32 to vector<64x128xf32>
      %34 = arith.maximumf %32, %33 : vector<64x128xf32>
      %35 = vector.broadcast %29 : vector<1x128xf32> to vector<64x128xf32>
      %36 = arith.mulf %35, %34 : vector<64x128xf32>
      %37 = arith.addf %arg9, %36 : vector<64x128xf32>
      %38 = vector.extract_strided_slice %28 {offsets = [1, 0], sizes = [1, 128], strides = [1, 1]} : vector<8x128xf32> to vector<1x128xf32>
      %39 = vector.extract_strided_slice %26 {offsets = [1, 0], sizes = [1, 128], strides = [1, 1]} : vector<8x128xf32> to vector<1x128xf32>
      %40 = vector.broadcast %39 : vector<1x128xf32> to vector<64x128xf32>
      %41 = arith.subf %13, %40 : vector<64x128xf32>
      %cst_18 = arith.constant 0.000000e+00 : f32
      %42 = vector.broadcast %cst_18 : f32 to vector<64x128xf32>
      %43 = arith.maximumf %41, %42 : vector<64x128xf32>
      %44 = vector.broadcast %38 : vector<1x128xf32> to vector<64x128xf32>
      %45 = arith.mulf %44, %43 : vector<64x128xf32>
      %46 = arith.addf %37, %45 : vector<64x128xf32>
      %47 = vector.extract_strided_slice %28 {offsets = [2, 0], sizes = [1, 128], strides = [1, 1]} : vector<8x128xf32> to vector<1x128xf32>
      %48 = vector.extract_strided_slice %26 {offsets = [2, 0], sizes = [1, 128], strides = [1, 1]} : vector<8x128xf32> to vector<1x128xf32>
      %49 = vector.broadcast %48 : vector<1x128xf32> to vector<64x128xf32>
      %50 = arith.subf %13, %49 : vector<64x128xf32>
      %cst_19 = arith.constant 0.000000e+00 : f32
      %51 = vector.broadcast %cst_19 : f32 to vector<64x128xf32>
      %52 = arith.maximumf %50, %51 : vector<64x128xf32>
      %53 = vector.broadcast %47 : vector<1x128xf32> to vector<64x128xf32>
      %54 = arith.mulf %53, %52 : vector<64x128xf32>
      %55 = arith.addf %46, %54 : vector<64x128xf32>
      %56 = vector.extract_strided_slice %28 {offsets = [3, 0], sizes = [1, 128], strides = [1, 1]} : vector<8x128xf32> to vector<1x128xf32>
      %57 = vector.extract_strided_slice %26 {offsets = [3, 0], sizes = [1, 128], strides = [1, 1]} : vector<8x128xf32> to vector<1x128xf32>
      %58 = vector.broadcast %57 : vector<1x128xf32> to vector<64x128xf32>
      %59 = arith.subf %13, %58 : vector<64x128xf32>
      %cst_20 = arith.constant 0.000000e+00 : f32
      %60 = vector.broadcast %cst_20 : f32 to vector<64x128xf32>
      %61 = arith.maximumf %59, %60 : vector<64x128xf32>
      %62 = vector.broadcast %56 : vector<1x128xf32> to vector<64x128xf32>
      %63 = arith.mulf %62, %61 : vector<64x128xf32>
      %64 = arith.addf %55, %63 : vector<64x128xf32>
      %65 = vector.extract_strided_slice %28 {offsets = [4, 0], sizes = [1, 128], strides = [1, 1]} : vector<8x128xf32> to vector<1x128xf32>
      %66 = vector.extract_strided_slice %26 {offsets = [4, 0], sizes = [1, 128], strides = [1, 1]} : vector<8x128xf32> to vector<1x128xf32>
      %67 = vector.broadcast %66 : vector<1x128xf32> to vector<64x128xf32>
      %68 = arith.subf %13, %67 : vector<64x128xf32>
      %cst_21 = arith.constant 0.000000e+00 : f32
      %69 = vector.broadcast %cst_21 : f32 to vector<64x128xf32>
      %70 = arith.maximumf %68, %69 : vector<64x128xf32>
      %71 = vector.broadcast %65 : vector<1x128xf32> to vector<64x128xf32>
      %72 = arith.mulf %71, %70 : vector<64x128xf32>
      %73 = arith.addf %64, %72 : vector<64x128xf32>
      %74 = vector.extract_strided_slice %28 {offsets = [5, 0], sizes = [1, 128], strides = [1, 1]} : vector<8x128xf32> to vector<1x128xf32>
      %75 = vector.extract_strided_slice %26 {offsets = [5, 0], sizes = [1, 128], strides = [1, 1]} : vector<8x128xf32> to vector<1x128xf32>
      %76 = vector.broadcast %75 : vector<1x128xf32> to vector<64x128xf32>
      %77 = arith.subf %13, %76 : vector<64x128xf32>
      %cst_22 = arith.constant 0.000000e+00 : f32
      %78 = vector.broadcast %cst_22 : f32 to vector<64x128xf32>
      %79 = arith.maximumf %77, %78 : vector<64x128xf32>
      %80 = vector.broadcast %74 : vector<1x128xf32> to vector<64x128xf32>
      %81 = arith.mulf %80, %79 : vector<64x128xf32>
      %82 = arith.addf %73, %81 : vector<64x128xf32>
      %83 = vector.extract_strided_slice %28 {offsets = [6, 0], sizes = [1, 128], strides = [1, 1]} : vector<8x128xf32> to vector<1x128xf32>
      %84 = vector.extract_strided_slice %26 {offsets = [6, 0], sizes = [1, 128], strides = [1, 1]} : vector<8x128xf32> to vector<1x128xf32>
      %85 = vector.broadcast %84 : vector<1x128xf32> to vector<64x128xf32>
      %86 = arith.subf %13, %85 : vector<64x128xf32>
      %cst_23 = arith.constant 0.000000e+00 : f32
      %87 = vector.broadcast %cst_23 : f32 to vector<64x128xf32>
      %88 = arith.maximumf %86, %87 : vector<64x128xf32>
      %89 = vector.broadcast %83 : vector<1x128xf32> to vector<64x128xf32>
      %90 = arith.mulf %89, %88 : vector<64x128xf32>
      %91 = arith.addf %82, %90 : vector<64x128xf32>
      %92 = vector.extract_strided_slice %28 {offsets = [7, 0], sizes = [1, 128], strides = [1, 1]} : vector<8x128xf32> to vector<1x128xf32>
      %93 = vector.extract_strided_slice %26 {offsets = [7, 0], sizes = [1, 128], strides = [1, 1]} : vector<8x128xf32> to vector<1x128xf32>
      %94 = vector.broadcast %93 : vector<1x128xf32> to vector<64x128xf32>
      %95 = arith.subf %13, %94 : vector<64x128xf32>
      %cst_24 = arith.constant 0.000000e+00 : f32
      %96 = vector.broadcast %cst_24 : f32 to vector<64x128xf32>
      %97 = arith.maximumf %95, %96 : vector<64x128xf32>
      %98 = vector.broadcast %92 : vector<1x128xf32> to vector<64x128xf32>
      %99 = arith.mulf %98, %97 : vector<64x128xf32>
      %100 = arith.addf %91, %99 : vector<64x128xf32>
      scf.yield %100 : vector<64x128xf32>
    }
    %c13_i32_13 = arith.constant 13 : i32
    %c0_14 = arith.constant 0 : index
    %c0_15 = arith.constant 0 : index
    %22 = vector.load %arg7[%c0_14, %c0_15] : memref<64x128xf32, #tpu.memory_space<vmem>>, vector<64x128xf32>
    tpu.vector_store %arg7[%c0_14, %c0_15], %21 {strides = array<i32>} : memref<64x128xf32, #tpu.memory_space<vmem>>, vector<64x128xf32>,
    return
  }
  func.func @transform_0(%arg0: i32) -> (i32, i32) {
    %c0_i32 = arith.constant 0 : i32
    %c0_i32_0 = arith.constant 0 : i32
    return %arg0, %c0_i32 : i32, i32
  }
  func.func @transform_1(%arg0: i32) -> (i32, i32) {
    %c0_i32 = arith.constant 0 : i32
    %c0_i32_0 = arith.constant 0 : i32
    return %arg0, %c0_i32 : i32, i32
  }
  func.func @transform_2(%arg0: i32) -> (i32, i32) {
    %c0_i32 = arith.constant 0 : i32
    %c0_i32_0 = arith.constant 0 : i32
    %c0_i32_1 = arith.constant 0 : i32
    return %c0_i32, %c0_i32_0 : i32, i32
  }
  func.func @transform_3(%arg0: i32) -> (i32, i32) {
    %c0_i32 = arith.constant 0 : i32
    %c0_i32_0 = arith.constant 0 : i32
    %c0_i32_1 = arith.constant 0 : i32
    return %c0_i32, %c0_i32_0 : i32, i32
  }
  func.func @transform_4(%arg0: i32) -> (i32, i32) {
    %c0_i32 = arith.constant 0 : i32
    %c0_i32_0 = arith.constant 0 : i32
    %c0_i32_1 = arith.constant 0 : i32
    return %c0_i32, %c0_i32_0 : i32, i32
  }
  func.func @transform_5(%arg0: i32) -> (i32, i32) {
    %c0_i32 = arith.constant 0 : i32
    %c0_i32_0 = arith.constant 0 : i32
    return %arg0, %c0_i32 : i32, i32
  }
  func.func @transform_6(%arg0: i32) -> (i32, i32) {
    %c0_i32 = arith.constant 0 : i32
    %c0_i32_0 = arith.constant 0 : i32
    return %arg0, %c0_i32 : i32, i32
  }
}

</mosaic_0001>

<llo_original>
// kernel: custom-call.2
$region0: #{custom-call.2}
  %s0 = inlined_call_operand.vmem [shape: f32[2,128,8,8], index: 0, kind: input, shape index: {}]
  %s1 = inlined_call_operand.vmem [shape: f32[2,128,8,8], index: 1, kind: input, shape index: {}]
  %s2 = inlined_call_operand.hbm [shape: c64[2,128,8,8], index: 2, kind: output, shape index: {}]
  %s3 = scalar_lea.hbm %s2, 2048
  $region1: #{custom-call.2} parent=0
    #allocation0 [shape = 's32[1]{0}', space=sflag, size = 0x4, scoped, tag = 'scoped memory for custom-call.2']
    %4 = vsyncpa [#allocation0], 0
    %s5 = sshll.u32 %s0, 4
    %s6 = int_to_ptr.vmem [resolvable:$true] %s5
    %8 = dma.vmem_to_hbm [thread:$0]  %s6, 2048, %s2, [#allocation0]
    %9 = dma.done [#allocation0], 2048
    %10 = vsyncpa [#allocation0], 1
  $region2: #{custom-call.2} parent=0
    #allocation1 [shape = 's32[1]{0}', space=sflag, size = 0x4, scoped, tag = 'scoped memory for custom-call.2']
    %11 = vsyncpa [#allocation1], 0
    %s12 = sshll.u32 %s1, 4
    %s13 = int_to_ptr.vmem [resolvable:$true] %s12
    %15 = dma.vmem_to_hbm [thread:$0]  %s13, 2048, %s3, [#allocation1]
    %16 = dma.done [#allocation1], 2048
    %17 = vsyncpa [#allocation1], 1

// kernel: custom-call.1
$region0: #{custom-call.1}
  %s0 = inlined_call_operand.hbm [shape: c64[2,128,8,8], index: 0, kind: input, shape index: {}]
  %s1 = inlined_call_operand.vmem [shape: f32[2,128,8,8], index: 1, kind: output, shape index: {}]
  %s2 = scalar_lea.hbm %s0, 2048
  $region1: #{custom-call.1} parent=0
    #allocation0 [shape = 's32[1]{0}', space=sflag, size = 0x4, scoped, tag = 'scoped memory for custom-call.1']
    %3 = vsyncpa [#allocation0], 0
    %s4 = sshll.u32 %s1, 4
    %s5 = int_to_ptr.vmem [resolvable:$true] %s4
    %7 = dma.hbm_to_vmem [thread:$0]  %s2, 2048, %s5, [#allocation0]
    %8 = dma.done [#allocation0], 2048
    %9 = vsyncpa [#allocation0], 1

// kernel: custom-call
$region0: #{custom-call}
  %s0 = inlined_call_operand.hbm [shape: c64[2,128,8,8], index: 0, kind: input, shape index: {}]
  %s1 = inlined_call_operand.vmem [shape: f32[2,128,8,8], index: 1, kind: output, shape index: {}]
  $region1: #{custom-call} parent=0
    #allocation0 [shape = 's32[1]{0}', space=sflag, size = 0x4, scoped, tag = 'scoped memory for custom-call']
    %2 = vsyncpa [#allocation0], 0
    %s3 = sshll.u32 %s1, 4
    %s4 = int_to_ptr.vmem [resolvable:$true] %s3
    %6 = dma.hbm_to_vmem [thread:$0]  %s0, 2048, %s4, [#allocation0]
    %7 = dma.done [#allocation0], 2048
    %8 = vsyncpa [#allocation0], 1

// kernel: _nonlinear_forward.1
$region0: #{_nonlinear_forward.1}
  #allocation0 [shape = 'u32[]', space=smem, size = 0x4, offset = 0x4, fixed_abs, tag = 'smem constant byte address 0x4 - core index']
  #allocation1 [shape = 'u32[144,128]{1,0:T(1,128)}', space=vmem, size = 0x12000, scoped, tag = 'internal scratch']
  %s0 = inlined_call_operand.vmem [shape: f32[128,128], index: 0, kind: input, shape index: {}]
  %s1 = inlined_call_operand.vmem [shape: f32[128,128], index: 1, kind: input, shape index: {}]
  %s2 = inlined_call_operand.hbm [shape: f32[104,128], index: 2, kind: input, shape index: {}]
  %s3 = inlined_call_operand.hbm [shape: f32[104,128], index: 3, kind: input, shape index: {}]
  %s4 = inlined_call_operand.vmem [shape: f32[8,128], index: 4, kind: input, shape index: {}]
  %s5 = inlined_call_operand.vmem [shape: f32[128,128], index: 5, kind: output, shape index: {0}]
  %s6 = inlined_call_operand.vmem [shape: f32[128,128], index: 6, kind: output, shape index: {1}]
  %7 = xla_tuple %s5, %s6
  %s8 = sld [smem:[#allocation0]]
  $region83: #{_nonlinear_forward.1} parent=0
    _
  %s10 = ssub.s32 1, %s8
  %s11 = scalar_select 0, %s10, %s8
  $region1: #{_nonlinear_forward.1} parent=0
    #allocation2 [shape = 'u8[53248]{0}', space=vmem, size = 0xd000, scoped, tag = 'input window, operand 2, single buffered']
    #allocation3 [shape = 's32[2]{0}', space=sflag, size = 0x8, scoped, tag = 'scoped memory for _nonlinear_forward.1']
    #allocation4 [shape = 'u8[53248]{0}', space=vmem, size = 0xd000, scoped, tag = 'input window, operand 3, single buffered']
    #allocation5 [shape = 's32[1]{0}', space=sflag, size = 0x4, scoped, tag = 'scoped memory for _nonlinear_forward.1']
    %12 = vsyncpa [#allocation3], 0
    %13 = vsyncpa [#allocation5], 0
    loop: start=0, step=1, limit=4
    $region2: #{_nonlinear_forward.1} parent=1 // loop_pre_header
      _
    $region3: #{_nonlinear_forward.1} parent=1 // loop_header
      %s15 = sphi 0, %s19
      %p16 = scmp.ge.s32.totalorder %s15, 4
      %s25 = sphi 0, %s27
      %s28 = sphi 0, %s25
      %s29 = sphi 0, %s28
      %s45 = sphi 0, %s29
      %s51 = sphi 0, %s53
      %s54 = sphi 0, %s51
      %s55 = sphi 0, %s54
      %s71 = sphi 0, %s55
      %s75 = sphi 0, %s75
      %s77 = sphi 0, %s75
      %s78 = sphi 0, %s77
      %s92 = sphi 0, %s78
      %s96 = sphi 0, %s96
      %s98 = sphi 0, %s96
      %s99 = sphi 0, %s98
      %s113 = sphi 0, %s99
      %s117 = sphi 0, %s117
      %s119 = sphi 0, %s117
      %s120 = sphi 0, %s119
      %s134 = sphi 0, %s120
      %s140 = sphi 0, %s142
      %s143 = sphi 0, %s140
      %s144 = sphi 0, %s143
      %s160 = sphi 0, %s144
      %s166 = sphi 0, %s168
      %s169 = sphi 0, %s166
      %s170 = sphi 0, %s169
      %s186 = sphi 0, %s170
    $region4: #{_nonlinear_forward.1} parent=1 // loop_header_branch
      %18 = sbr.rel (%p16) target = $region8
    $region5: #{_nonlinear_forward.1} parent=1 // loop_body
      %s20 = ssub.s32 %s15, 1
      %s21 = ssub.s32 %s15, 2
      %s22 = sadd.s32 %s15, 1
      %s23 = ssub.s32 %s15, %s22
      %p24 = scmp.eq.s32.totalorder %s23, 0
      %s26 = sadd.s32 %s25, 1
      %s27 = scalar_select %p24, %s25, %s26
      %p30 = pneg %p24
      %p31 = scmp.eq.s32.totalorder %s15, 1
      %p32 = por %p30, %p31
      %p33 = scmp.ne.s32.totalorder %s25, %s28
      %p34 = scmp.eq.s32.totalorder %s15, 0
      %p35 = por %p33, %p34
      %p36 = scmp.ne.s32.totalorder %s25, %s28
      %p37 = scmp.eq.s32.totalorder %s20, 1
      %p38 = por %p36, %p37
      %p39 = scmp.ne.s32.totalorder %s28, %s29
      %p40 = scmp.eq.s32.totalorder %s20, 0
      %p41 = por %p39, %p40
      %p42 = scmp.ne.s32.totalorder %s28, %s29
      %p43 = scmp.eq.s32.totalorder %s21, 1
      %p44 = por %p42, %p43
      %p46 = scmp.ne.s32.totalorder %s29, %s45
      %p47 = scmp.eq.s32.totalorder %s21, 0
      %p48 = por %p46, %p47
      %s49 = ssub.s32 %s15, %s22
      %p50 = scmp.eq.s32.totalorder %s49, 0
      %s52 = sadd.s32 %s51, 1
      %s53 = scalar_select %p50, %s51, %s52
      %p56 = pneg %p50
      %p57 = scmp.eq.s32.totalorder %s15, 1
      %p58 = por %p56, %p57
      %p59 = scmp.ne.s32.totalorder %s51, %s54
      %p60 = scmp.eq.s32.totalorder %s15, 0
      %p61 = por %p59, %p60
      %p62 = scmp.ne.s32.totalorder %s51, %s54
      %p63 = scmp.eq.s32.totalorder %s20, 1
      %p64 = por %p62, %p63
      %p65 = scmp.ne.s32.totalorder %s54, %s55
      %p66 = scmp.eq.s32.totalorder %s20, 0
      %p67 = por %p65, %p66
      %p68 = scmp.ne.s32.totalorder %s54, %s55
      %p69 = scmp.eq.s32.totalorder %s21, 1
      %p70 = por %p68, %p69
      %p72 = scmp.ne.s32.totalorder %s55, %s71
      %p73 = scmp.eq.s32.totalorder %s21, 0
      %p74 = por %p72, %p73
      %s76 = sadd.s32 %s75, 1
      %p79 = scmp.eq.s32.totalorder %s15, 1
      %p80 = scmp.ne.s32.totalorder %s75, %s77
      %p81 = scmp.eq.s32.totalorder %s15, 0
      %p82 = por %p80, %p81
      %p83 = scmp.ne.s32.totalorder %s75, %s77
      %p84 = scmp.eq.s32.totalorder %s20, 1
      %p85 = por %p83, %p84
      %p86 = scmp.ne.s32.totalorder %s77, %s78
      %p87 = scmp.eq.s32.totalorder %s20, 0
      %p88 = por %p86, %p87
      %p89 = scmp.ne.s32.totalorder %s77, %s78
      %p90 = scmp.eq.s32.totalorder %s21, 1
      %p91 = por %p89, %p90
      %p93 = scmp.ne.s32.totalorder %s78, %s92
      %p94 = scmp.eq.s32.totalorder %s21, 0
      %p95 = por %p93, %p94
      %s97 = sadd.s32 %s96, 1
      %p100 = scmp.eq.s32.totalorder %s15, 1
      %p101 = scmp.ne.s32.totalorder %s96, %s98
      %p102 = scmp.eq.s32.totalorder %s15, 0
      %p103 = por %p101, %p102
      %p104 = scmp.ne.s32.totalorder %s96, %s98
      %p105 = scmp.eq.s32.totalorder %s20, 1
      %p106 = por %p104, %p105
      %p107 = scmp.ne.s32.totalorder %s98, %s99
      %p108 = scmp.eq.s32.totalorder %s20, 0
      %p109 = por %p107, %p108
      %p110 = scmp.ne.s32.totalorder %s98, %s99
      %p111 = scmp.eq.s32.totalorder %s21, 1
      %p112 = por %p110, %p111
      %p114 = scmp.ne.s32.totalorder %s99, %s113
      %p115 = scmp.eq.s32.totalorder %s21, 0
      %p116 = por %p114, %p115
      %s118 = sadd.s32 %s117, 1
      %p121 = scmp.eq.s32.totalorder %s15, 1
      %p122 = scmp.ne.s32.totalorder %s117, %s119
      %p123 = scmp.eq.s32.totalorder %s15, 0
      %p124 = por %p122, %p123
      %p125 = scmp.ne.s32.totalorder %s117, %s119
      %p126 = scmp.eq.s32.totalorder %s20, 1
      %p127 = por %p125, %p126
      %p128 = scmp.ne.s32.totalorder %s119, %s120
      %p129 = scmp.eq.s32.totalorder %s20, 0
      %p130 = por %p128, %p129
      %p131 = scmp.ne.s32.totalorder %s119, %s120
      %p132 = scmp.eq.s32.totalorder %s21, 1
      %p133 = por %p131, %p132
      %p135 = scmp.ne.s32.totalorder %s120, %s134
      %p136 = scmp.eq.s32.totalorder %s21, 0
      %p137 = por %p135, %p136
      %s138 = ssub.s32 %s15, %s22
      %p139 = scmp.eq.s32.totalorder %s138, 0
      %s141 = sadd.s32 %s140, 1
      %s142 = scalar_select %p139, %s140, %s141
      %p145 = pneg %p139
      %p146 = scmp.eq.s32.totalorder %s15, 1
      %p147 = por %p145, %p146
      %p148 = scmp.ne.s32.totalorder %s140, %s143
      %p149 = scmp.eq.s32.totalorder %s15, 0
      %p150 = por %p148, %p149
      %p151 = scmp.ne.s32.totalorder %s140, %s143
      %p152 = scmp.eq.s32.totalorder %s20, 1
      %p153 = por %p151, %p152
      %p154 = scmp.ne.s32.totalorder %s143, %s144
      %p155 = scmp.eq.s32.totalorder %s20, 0
      %p156 = por %p154, %p155
      %p157 = scmp.ne.s32.totalorder %s143, %s144
      %p158 = scmp.eq.s32.totalorder %s21, 1
      %p159 = por %p157, %p158
      %p161 = scmp.ne.s32.totalorder %s144, %s160
      %p162 = scmp.eq.s32.totalorder %s21, 0
      %p163 = por %p161, %p162
      %s164 = ssub.s32 %s15, %s22
      %p165 = scmp.eq.s32.totalorder %s164, 0
      %s167 = sadd.s32 %s166, 1
      %s168 = scalar_select %p165, %s166, %s167
      %p171 = pneg %p165
      %p172 = scmp.eq.s32.totalorder %s15, 1
      %p173 = por %p171, %p172
      %p174 = scmp.ne.s32.totalorder %s166, %s169
      %p175 = scmp.eq.s32.totalorder %s15, 0
      %p176 = por %p174, %p175
      %p177 = scmp.ne.s32.totalorder %s166, %s169
      %p178 = scmp.eq.s32.totalorder %s20, 1
      %p179 = por %p177, %p178
      %p180 = scmp.ne.s32.totalorder %s169, %s170
      %p181 = scmp.eq.s32.totalorder %s20, 0
      %p182 = por %p180, %p181
      %p183 = scmp.ne.s32.totalorder %s169, %s170
      %p184 = scmp.eq.s32.totalorder %s21, 1
      %p185 = por %p183, %p184
      %p187 = scmp.ne.s32.totalorder %s170, %s186
      %p188 = scmp.eq.s32.totalorder %s21, 0
      %p189 = por %p187, %p188
      %p190 = scmp.le.s32.totalorder 1, %s15
      %p191 = scmp.lt.s32.totalorder %s15, 3
      %p192 = pnand %p190, %p191
      %p193 = pneg %p192
      // Predicated region
      $region9: #{_nonlinear_forward.1} parent=5 // pred_check
        _
      $region10: #{_nonlinear_forward.1} parent=5 // pred_check_branch
        %195 = sbr.rel (%p192) target = $region12
      $region11: #{_nonlinear_forward.1} parent=5 // pred_region
        %s196 = ssub.s32 %s15, 1
        // Predicated region
        $region13: #{_nonlinear_forward.1} parent=11 // pred_check
          %p197 = pneg %p88
        $region14: #{_nonlinear_forward.1} parent=11 // pred_check_branch
          %199 = sbr.rel (%p197) target = $region16
        $region15: #{_nonlinear_forward.1} parent=11 // pred_region
          %s201 = ssub.s32 1664, 1664
          %202 = vsyncadd [#allocation3], %s201
          %s203 = sshll.u32 [#allocation2], 4
          %s204 = int_to_ptr.vmem [resolvable:$true] %s203
          %209 = dma.hbm_to_vmem [thread:$0]  %s2, 1664, %s204, [#allocation3], 128, 128, 8
        $region16: #{_nonlinear_forward.1} parent=11 // pred_fallthru
          _
        // Predicated region
        $region17: #{_nonlinear_forward.1} parent=11 // pred_check
          %p210 = pneg %p109
        $region18: #{_nonlinear_forward.1} parent=11 // pred_check_branch
          %212 = sbr.rel (%p210) target = $region20
        $region19: #{_nonlinear_forward.1} parent=11 // pred_region
          %s214 = ssub.s32 1664, 1664
          %215 = vsyncadd [#allocation5], %s214
          %s216 = sshll.u32 [#allocation4], 4
          %s217 = int_to_ptr.vmem [resolvable:$true] %s216
          %222 = dma.hbm_to_vmem [thread:$0]  %s3, 1664, %s217, [#allocation5], 128, 128, 8
        $region20: #{_nonlinear_forward.1} parent=11 // pred_fallthru
          _
        // Predicated region
        $region21: #{_nonlinear_forward.1} parent=11 // pred_check
          %p223 = pneg %p130
        $region22: #{_nonlinear_forward.1} parent=11 // pred_check_branch
          %225 = sbr.rel (%p223) target = $region24
        $region23: #{_nonlinear_forward.1} parent=11 // pred_region
          _
        $region24: #{_nonlinear_forward.1} parent=11 // pred_fallthru
          _
      $region12: #{_nonlinear_forward.1} parent=5 // pred_fallthru
        _
      %p226 = scmp.lt.s32.totalorder %s15, 2
      // Predicated region
      $region25: #{_nonlinear_forward.1} parent=5 // pred_check
        %p227 = pneg %p226
      $region26: #{_nonlinear_forward.1} parent=5 // pred_check_branch
        %229 = sbr.rel (%p227) target = $region28
      $region27: #{_nonlinear_forward.1} parent=5 // pred_region
        // Predicated region
        $region29: #{_nonlinear_forward.1} parent=27 // pred_check
          %p230 = pneg %p35
        $region30: #{_nonlinear_forward.1} parent=27 // pred_check_branch
          %232 = sbr.rel (%p230) target = $region32
        $region31: #{_nonlinear_forward.1} parent=27 // pred_region
          %s233 = smul.u32 8, %s15
          %p234 = scmp.lt.s32.totalorder %s233, 15
          %s235 = scalar_select %p234, %s233, 15
          %s236 = smul.addr %s235, 8
          %s237 = scalar_lea.vmem %s0, %s236
          %s238 = smul.u32 8, %s15
        $region32: #{_nonlinear_forward.1} parent=27 // pred_fallthru
          _
        // Predicated region
        $region33: #{_nonlinear_forward.1} parent=27 // pred_check
          %p239 = pneg %p61
        $region34: #{_nonlinear_forward.1} parent=27 // pred_check_branch
          %241 = sbr.rel (%p239) target = $region36
        $region35: #{_nonlinear_forward.1} parent=27 // pred_region
          %s242 = smul.u32 8, %s15
          %p243 = scmp.lt.s32.totalorder %s242, 15
          %s244 = scalar_select %p243, %s242, 15
          %s245 = smul.addr %s244, 8
          %s246 = scalar_lea.vmem %s1, %s245
          %s247 = smul.u32 8, %s15
        $region36: #{_nonlinear_forward.1} parent=27 // pred_fallthru
          _
      $region28: #{_nonlinear_forward.1} parent=5 // pred_fallthru
        _
      %p248 = scmp.le.s32.totalorder 1, %s15
      %p249 = scmp.lt.s32.totalorder %s15, 3
      %p250 = pnand %p248, %p249
      %p251 = pneg %p250
      // Predicated region
      $region37: #{_nonlinear_forward.1} parent=5 // pred_check
        _
      $region38: #{_nonlinear_forward.1} parent=5 // pred_check_branch
        %253 = sbr.rel (%p250) target = $region40
      $region39: #{_nonlinear_forward.1} parent=5 // pred_region
        %s254 = ssub.s32 %s15, 1
        // Predicated region
        $region41: #{_nonlinear_forward.1} parent=39 // pred_check
          %p255 = pneg %p88
        $region42: #{_nonlinear_forward.1} parent=39 // pred_check_branch
          %257 = sbr.rel (%p255) target = $region44
        $region43: #{_nonlinear_forward.1} parent=39 // pred_region
          %258 = dma.done [#allocation3], 1664
        $region44: #{_nonlinear_forward.1} parent=39 // pred_fallthru
          _
        // Predicated region
        $region45: #{_nonlinear_forward.1} parent=39 // pred_check
          %p259 = pneg %p109
        $region46: #{_nonlinear_forward.1} parent=39 // pred_check_branch
          %261 = sbr.rel (%p259) target = $region48
        $region47: #{_nonlinear_forward.1} parent=39 // pred_region
          %262 = dma.done [#allocation5], 1664
        $region48: #{_nonlinear_forward.1} parent=39 // pred_fallthru
          _
        %s263 = smul.u32 8, %s20
        %p264 = scmp.lt.s32.totalorder %s263, 15
        %s265 = scalar_select %p264, %s263, 15
        %s266 = smul.addr %s265, 8
        %s267 = scalar_lea.vmem %s0, %s266
        %p268 = pneg %p41
        %p269 = pneg %p38
        %s270 = smul.u32 8, %s20
        %p271 = scmp.lt.s32.totalorder %s270, 15
        %s272 = scalar_select %p271, %s270, 15
        %s273 = smul.addr %s272, 8
        %s274 = scalar_lea.vmem %s1, %s273
        %p275 = pneg %p67
        %p276 = pneg %p64
        %p277 = pneg %p88
        %p278 = pneg %p85
        %p279 = pneg %p109
        %p280 = pneg %p106
        %p281 = pneg %p130
        %p282 = pneg %p127
        %p283 = pneg %p156
        %p284 = pneg %p153
        %s285 = smul.u32 8, %s20
        %p286 = scmp.lt.s32.totalorder %s285, 15
        %s287 = scalar_select %p286, %s285, 15
        %s288 = smul.addr %s287, 8
        %s289 = scalar_lea.vmem %s5, %s288
        %p290 = pneg %p182
        %p291 = pneg %p179
        %s292 = smul.u32 8, %s20
        %p293 = scmp.lt.s32.totalorder %s292, 15
        %s294 = scalar_select %p293, %s292, 15
        %s295 = smul.addr %s294, 8
        %s296 = scalar_lea.vmem %s6, %s295
        %s297 = smul.u32 8, %s20
        %p298 = scmp.lt.s32.totalorder %s297, 15
        %s299 = scalar_select %p298, %s297, 15
        %s300 = smul.addr %s299, 8
        %s301 = scalar_lea.vmem %s0, %s300
        %s302 = smul.u32 8, %s20
        %s303 = smul.u32 8, %s20
        %p304 = scmp.lt.s32.totalorder %s303, 15
        %s305 = scalar_select %p304, %s303, 15
        %s306 = smul.addr %s305, 8
        %s307 = scalar_lea.vmem %s1, %s306
        %s308 = smul.u32 8, %s20
        %s309 = smul.u32 8, %s20
        %p310 = scmp.lt.s32.totalorder %s309, 15
        %s311 = scalar_select %p310, %s309, 15
        %s312 = smul.addr %s311, 8
        %s313 = scalar_lea.vmem %s5, %s312
        %s314 = smul.u32 8, %s20
        %s315 = smul.u32 8, %s20
        %p316 = scmp.lt.s32.totalorder %s315, 15
        %s317 = scalar_select %p316, %s315, 15
        %s318 = smul.addr %s317, 8
        %s319 = scalar_lea.vmem %s6, %s318
        %s320 = smul.u32 8, %s20
        %v321 = vld [vmem:[%s4] sm:$0x1]
        %v322 = vld [vmem:[%s4 + $0x1] sm:$0x1]
        %v323 = vld [vmem:[%s4 + $0x2] sm:$0x1]
        %v324 = vld [vmem:[%s301] sm:$0xff]
        %v325 = vld [vmem:[%s301 + $0x8] sm:$0xff]
        %v326 = vld [vmem:[%s301 + $0x10] sm:$0xff]
        %v327 = vld [vmem:[%s301 + $0x18] sm:$0xff]
        %v328 = vld [vmem:[%s301 + $0x20] sm:$0xff]
        %v329 = vld [vmem:[%s301 + $0x28] sm:$0xff]
        %v330 = vld [vmem:[%s301 + $0x30] sm:$0xff]
        %v331 = vld [vmem:[%s301 + $0x38] sm:$0xff]
        %v332 = vlaneseq
        %v333 = vshrl.u32 %v332, 7
        %v334 = vsub.s32 0, %v333
        %v335 = vrot.slane %v321, %v334
        %v336 = vsub.f32 %v324, %v335
        %v337 = vsub.f32 %v325, %v335
        %v338 = vsub.f32 %v326, %v335
        %v339 = vsub.f32 %v327, %v335
        %v340 = vsub.f32 %v328, %v335
        %v341 = vsub.f32 %v329, %v335
        %v342 = vsub.f32 %v330, %v335
        %v343 = vsub.f32 %v331, %v335
        %v344 = vlaneseq
        %v345 = vshrl.u32 %v344, 7
        %v346 = vsub.s32 0, %v345
        %v347 = vrot.slane %v322, %v346
        %v348 = vmul.f32 %v347, %v336
        %v349 = vmul.f32 %v347, %v337
        %v350 = vmul.f32 %v347, %v338
        %v351 = vmul.f32 %v347, %v339
        %v352 = vmul.f32 %v347, %v340
        %v353 = vmul.f32 %v347, %v341
        %v354 = vmul.f32 %v347, %v342
        %v355 = vmul.f32 %v347, %v343
        %v356 = vlaneseq
        %v357 = vshrl.u32 %v356, 7
        %v358 = vsub.s32 0, %v357
        %v359 = vrot.slane %v323, %v358
        %v360 = vadd.f32 %v359, %v348
        %v361 = vadd.f32 %v359, %v349
        %v362 = vadd.f32 %v359, %v350
        %v363 = vadd.f32 %v359, %v351
        %v364 = vadd.f32 %v359, %v352
        %v365 = vadd.f32 %v359, %v353
        %v366 = vadd.f32 %v359, %v354
        %v367 = vadd.f32 %v359, %v355
        loop: start=0, step=1, limit=13
        $region49: #{_nonlinear_forward.1} parent=39 // loop_pre_header
          _
        $region50: #{_nonlinear_forward.1} parent=39 // loop_header
          %s369 = sphi 0, %s373
          %p370 = scmp.ge.s32.totalorder %s369, 13
          %v374 = vphi %v360, %v699
          %v375 = vphi %v361, %v700
          %v376 = vphi %v362, %v701
          %v377 = vphi %v363, %v702
          %v378 = vphi %v364, %v703
          %v379 = vphi %v365, %v704
          %v380 = vphi %v366, %v705
          %v381 = vphi %v367, %v706
        $region51: #{_nonlinear_forward.1} parent=39 // loop_header_branch
          %372 = sbr.rel (%p370) target = $region55
        $region52: #{_nonlinear_forward.1} parent=39 // loop_body
          %s382 = smul.u32 %s369, 8
          %s383 = scalar_lea.vmem [#allocation2], %s382
          %v384 = vld [vmem:[%s383] sm:$0xff]
          %s385 = scalar_lea.vmem [#allocation4], %s382
          %v386 = vld [vmem:[%s385] sm:$0xff]
          %v387 = vlaneseq
          %v388 = vshrl.u32 %v387, 7
          %v389 = vsub.s32 0, %v388
          %v390 = vrot.slane %v384, %v389
          %v391 = vsub.f32 %v324, %v390
          %v392 = vsub.f32 %v325, %v390
          %v393 = vsub.f32 %v326, %v390
          %v394 = vsub.f32 %v327, %v390
          %v395 = vsub.f32 %v328, %v390
          %v396 = vsub.f32 %v329, %v390
          %v397 = vsub.f32 %v330, %v390
          %v398 = vsub.f32 %v331, %v390
          %v399 = vmax.f32 %v391, 0.0
          %v400 = vmax.f32 %v392, 0.0
          %v401 = vmax.f32 %v393, 0.0
          %v402 = vmax.f32 %v394, 0.0
          %v403 = vmax.f32 %v395, 0.0
          %v404 = vmax.f32 %v396, 0.0
          %v405 = vmax.f32 %v397, 0.0
          %v406 = vmax.f32 %v398, 0.0
          %v407 = vlaneseq
          %v408 = vshrl.u32 %v407, 7
          %v409 = vsub.s32 0, %v408
          %v410 = vrot.slane %v386, %v409
          %v411 = vmul.f32 %v410, %v399
          %v412 = vmul.f32 %v410, %v400
          %v413 = vmul.f32 %v410, %v401
          %v414 = vmul.f32 %v410, %v402
          %v415 = vmul.f32 %v410, %v403
          %v416 = vmul.f32 %v410, %v404
          %v417 = vmul.f32 %v410, %v405
          %v418 = vmul.f32 %v410, %v406
          %v419 = vadd.f32 %v374, %v411
          %v420 = vadd.f32 %v375, %v412
          %v421 = vadd.f32 %v376, %v413
          %v422 = vadd.f32 %v377, %v414
          %v423 = vadd.f32 %v378, %v415
          %v424 = vadd.f32 %v379, %v416
          %v425 = vadd.f32 %v380, %v417
          %v426 = vadd.f32 %v381, %v418
          %v427 = vlaneseq
          %v428 = vshrl.u32 %v427, 7
          %v429 = vsub.s32 1, %v428
          %v430 = vrot.slane %v384, %v429
          %v431 = vsub.f32 %v324, %v430
          %v432 = vsub.f32 %v325, %v430
          %v433 = vsub.f32 %v326, %v430
          %v434 = vsub.f32 %v327, %v430
          %v435 = vsub.f32 %v328, %v430
          %v436 = vsub.f32 %v329, %v430
          %v437 = vsub.f32 %v330, %v430
          %v438 = vsub.f32 %v331, %v430
          %v439 = vmax.f32 %v431, 0.0
          %v440 = vmax.f32 %v432, 0.0
          %v441 = vmax.f32 %v433, 0.0
          %v442 = vmax.f32 %v434, 0.0
          %v443 = vmax.f32 %v435, 0.0
          %v444 = vmax.f32 %v436, 0.0
          %v445 = vmax.f32 %v437, 0.0
          %v446 = vmax.f32 %v438, 0.0
          %v447 = vlaneseq
          %v448 = vshrl.u32 %v447, 7
          %v449 = vsub.s32 1, %v448
          %v450 = vrot.slane %v386, %v449
          %v451 = vmul.f32 %v450, %v439
          %v452 = vmul.f32 %v450, %v440
          %v453 = vmul.f32 %v450, %v441
          %v454 = vmul.f32 %v450, %v442
          %v455 = vmul.f32 %v450, %v443
          %v456 = vmul.f32 %v450, %v444
          %v457 = vmul.f32 %v450, %v445
          %v458 = vmul.f32 %v450, %v446
          %v459 = vadd.f32 %v419, %v451
          %v460 = vadd.f32 %v420, %v452
          %v461 = vadd.f32 %v421, %v453
          %v462 = vadd.f32 %v422, %v454
          %v463 = vadd.f32 %v423, %v455
          %v464 = vadd.f32 %v424, %v456
          %v465 = vadd.f32 %v425, %v457
          %v466 = vadd.f32 %v426, %v458
          %v467 = vlaneseq
          %v468 = vshrl.u32 %v467, 7
          %v469 = vsub.s32 2, %v468
          %v470 = vrot.slane %v384, %v469
          %v471 = vsub.f32 %v324, %v470
          %v472 = vsub.f32 %v325, %v470
          %v473 = vsub.f32 %v326, %v470
          %v474 = vsub.f32 %v327, %v470
          %v475 = vsub.f32 %v328, %v470
          %v476 = vsub.f32 %v329, %v470
          %v477 = vsub.f32 %v330, %v470
          %v478 = vsub.f32 %v331, %v470
          %v479 = vmax.f32 %v471, 0.0
          %v480 = vmax.f32 %v472, 0.0
          %v481 = vmax.f32 %v473, 0.0
          %v482 = vmax.f32 %v474, 0.0
          %v483 = vmax.f32 %v475, 0.0
          %v484 = vmax.f32 %v476, 0.0
          %v485 = vmax.f32 %v477, 0.0
          %v486 = vmax.f32 %v478, 0.0
          %v487 = vlaneseq
          %v488 = vshrl.u32 %v487, 7
          %v489 = vsub.s32 2, %v488
          %v490 = vrot.slane %v386, %v489
          %v491 = vmul.f32 %v490, %v479
          %v492 = vmul.f32 %v490, %v480
          %v493 = vmul.f32 %v490, %v481
          %v494 = vmul.f32 %v490, %v482
          %v495 = vmul.f32 %v490, %v483
          %v496 = vmul.f32 %v490, %v484
          %v497 = vmul.f32 %v490, %v485
          %v498 = vmul.f32 %v490, %v486
          %v499 = vadd.f32 %v459, %v491
          %v500 = vadd.f32 %v460, %v492
          %v501 = vadd.f32 %v461, %v493
          %v502 = vadd.f32 %v462, %v494
          %v503 = vadd.f32 %v463, %v495
          %v504 = vadd.f32 %v464, %v496
          %v505 = vadd.f32 %v465, %v497
          %v506 = vadd.f32 %v466, %v498
          %v507 = vlaneseq
          %v508 = vshrl.u32 %v507, 7
          %v509 = vsub.s32 3, %v508
          %v510 = vrot.slane %v384, %v509
          %v511 = vsub.f32 %v324, %v510
          %v512 = vsub.f32 %v325, %v510
          %v513 = vsub.f32 %v326, %v510
          %v514 = vsub.f32 %v327, %v510
          %v515 = vsub.f32 %v328, %v510
          %v516 = vsub.f32 %v329, %v510
          %v517 = vsub.f32 %v330, %v510
          %v518 = vsub.f32 %v331, %v510
          %v519 = vmax.f32 %v511, 0.0
          %v520 = vmax.f32 %v512, 0.0
          %v521 = vmax.f32 %v513, 0.0
          %v522 = vmax.f32 %v514, 0.0
          %v523 = vmax.f32 %v515, 0.0
          %v524 = vmax.f32 %v516, 0.0
          %v525 = vmax.f32 %v517, 0.0
          %v526 = vmax.f32 %v518, 0.0
          %v527 = vlaneseq
          %v528 = vshrl.u32 %v527, 7
          %v529 = vsub.s32 3, %v528
          %v530 = vrot.slane %v386, %v529
          %v531 = vmul.f32 %v530, %v519
          %v532 = vmul.f32 %v530, %v520
          %v533 = vmul.f32 %v530, %v521
          %v534 = vmul.f32 %v530, %v522
          %v535 = vmul.f32 %v530, %v523
          %v536 = vmul.f32 %v530, %v524
          %v537 = vmul.f32 %v530, %v525
          %v538 = vmul.f32 %v530, %v526
          %v539 = vadd.f32 %v499, %v531
          %v540 = vadd.f32 %v500, %v532
          %v541 = vadd.f32 %v501, %v533
          %v542 = vadd.f32 %v502, %v534
          %v543 = vadd.f32 %v503, %v535
          %v544 = vadd.f32 %v504, %v536
          %v545 = vadd.f32 %v505, %v537
          %v546 = vadd.f32 %v506, %v538
          %v547 = vlaneseq
          %v548 = vshrl.u32 %v547, 7
          %v549 = vsub.s32 4, %v548
          %v550 = vrot.slane %v384, %v549
          %v551 = vsub.f32 %v324, %v550
          %v552 = vsub.f32 %v325, %v550
          %v553 = vsub.f32 %v326, %v550
          %v554 = vsub.f32 %v327, %v550
          %v555 = vsub.f32 %v328, %v550
          %v556 = vsub.f32 %v329, %v550
          %v557 = vsub.f32 %v330, %v550
          %v558 = vsub.f32 %v331, %v550
          %v559 = vmax.f32 %v551, 0.0
          %v560 = vmax.f32 %v552, 0.0
          %v561 = vmax.f32 %v553, 0.0
          %v562 = vmax.f32 %v554, 0.0
          %v563 = vmax.f32 %v555, 0.0
          %v564 = vmax.f32 %v556, 0.0
          %v565 = vmax.f32 %v557, 0.0
          %v566 = vmax.f32 %v558, 0.0
          %v567 = vlaneseq
          %v568 = vshrl.u32 %v567, 7
          %v569 = vsub.s32 4, %v568
          %v570 = vrot.slane %v386, %v569
          %v571 = vmul.f32 %v570, %v559
          %v572 = vmul.f32 %v570, %v560
          %v573 = vmul.f32 %v570, %v561
          %v574 = vmul.f32 %v570, %v562
          %v575 = vmul.f32 %v570, %v563
          %v576 = vmul.f32 %v570, %v564
          %v577 = vmul.f32 %v570, %v565
          %v578 = vmul.f32 %v570, %v566
          %v579 = vadd.f32 %v539, %v571
          %v580 = vadd.f32 %v540, %v572
          %v581 = vadd.f32 %v541, %v573
          %v582 = vadd.f32 %v542, %v574
          %v583 = vadd.f32 %v543, %v575
          %v584 = vadd.f32 %v544, %v576
          %v585 = vadd.f32 %v545, %v577
          %v586 = vadd.f32 %v546, %v578
          %v587 = vlaneseq
          %v588 = vshrl.u32 %v587, 7
          %v589 = vsub.s32 5, %v588
          %v590 = vrot.slane %v384, %v589
          %v591 = vsub.f32 %v324, %v590
          %v592 = vsub.f32 %v325, %v590
          %v593 = vsub.f32 %v326, %v590
          %v594 = vsub.f32 %v327, %v590
          %v595 = vsub.f32 %v328, %v590
          %v596 = vsub.f32 %v329, %v590
          %v597 = vsub.f32 %v330, %v590
          %v598 = vsub.f32 %v331, %v590
          %v599 = vmax.f32 %v591, 0.0
          %v600 = vmax.f32 %v592, 0.0
          %v601 = vmax.f32 %v593, 0.0
          %v602 = vmax.f32 %v594, 0.0
          %v603 = vmax.f32 %v595, 0.0
          %v604 = vmax.f32 %v596, 0.0
          %v605 = vmax.f32 %v597, 0.0
          %v606 = vmax.f32 %v598, 0.0
          %v607 = vlaneseq
          %v608 = vshrl.u32 %v607, 7
          %v609 = vsub.s32 5, %v608
          %v610 = vrot.slane %v386, %v609
          %v611 = vmul.f32 %v610, %v599
          %v612 = vmul.f32 %v610, %v600
          %v613 = vmul.f32 %v610, %v601
          %v614 = vmul.f32 %v610, %v602
          %v615 = vmul.f32 %v610, %v603
          %v616 = vmul.f32 %v610, %v604
          %v617 = vmul.f32 %v610, %v605
          %v618 = vmul.f32 %v610, %v606
          %v619 = vadd.f32 %v579, %v611
          %v620 = vadd.f32 %v580, %v612
          %v621 = vadd.f32 %v581, %v613
          %v622 = vadd.f32 %v582, %v614
          %v623 = vadd.f32 %v583, %v615
          %v624 = vadd.f32 %v584, %v616
          %v625 = vadd.f32 %v585, %v617
          %v626 = vadd.f32 %v586, %v618
          %v627 = vlaneseq
          %v628 = vshrl.u32 %v627, 7
          %v629 = vsub.s32 6, %v628
          %v630 = vrot.slane %v384, %v629
          %v631 = vsub.f32 %v324, %v630
          %v632 = vsub.f32 %v325, %v630
          %v633 = vsub.f32 %v326, %v630
          %v634 = vsub.f32 %v327, %v630
          %v635 = vsub.f32 %v328, %v630
          %v636 = vsub.f32 %v329, %v630
          %v637 = vsub.f32 %v330, %v630
          %v638 = vsub.f32 %v331, %v630
          %v639 = vmax.f32 %v631, 0.0
          %v640 = vmax.f32 %v632, 0.0
          %v641 = vmax.f32 %v633, 0.0
          %v642 = vmax.f32 %v634, 0.0
          %v643 = vmax.f32 %v635, 0.0
          %v644 = vmax.f32 %v636, 0.0
          %v645 = vmax.f32 %v637, 0.0
          %v646 = vmax.f32 %v638, 0.0
          %v647 = vlaneseq
          %v648 = vshrl.u32 %v647, 7
          %v649 = vsub.s32 6, %v648
          %v650 = vrot.slane %v386, %v649
          %v651 = vmul.f32 %v650, %v639
          %v652 = vmul.f32 %v650, %v640
          %v653 = vmul.f32 %v650, %v641
          %v654 = vmul.f32 %v650, %v642
          %v655 = vmul.f32 %v650, %v643
          %v656 = vmul.f32 %v650, %v644
          %v657 = vmul.f32 %v650, %v645
          %v658 = vmul.f32 %v650, %v646
          %v659 = vadd.f32 %v619, %v651
          %v660 = vadd.f32 %v620, %v652
          %v661 = vadd.f32 %v621, %v653
          %v662 = vadd.f32 %v622, %v654
          %v663 = vadd.f32 %v623, %v655
          %v664 = vadd.f32 %v624, %v656
          %v665 = vadd.f32 %v625, %v657
          %v666 = vadd.f32 %v626, %v658
          %v667 = vlaneseq
          %v668 = vshrl.u32 %v667, 7
          %v669 = vsub.s32 7, %v668
          %v670 = vrot.slane %v384, %v669
          %v671 = vsub.f32 %v324, %v670
          %v672 = vsub.f32 %v325, %v670
          %v673 = vsub.f32 %v326, %v670
          %v674 = vsub.f32 %v327, %v670
          %v675 = vsub.f32 %v328, %v670
          %v676 = vsub.f32 %v329, %v670
          %v677 = vsub.f32 %v330, %v670
          %v678 = vsub.f32 %v331, %v670
          %v679 = vmax.f32 %v671, 0.0
          %v680 = vmax.f32 %v672, 0.0
          %v681 = vmax.f32 %v673, 0.0
          %v682 = vmax.f32 %v674, 0.0
          %v683 = vmax.f32 %v675, 0.0
          %v684 = vmax.f32 %v676, 0.0
          %v685 = vmax.f32 %v677, 0.0
          %v686 = vmax.f32 %v678, 0.0
          %v687 = vlaneseq
          %v688 = vshrl.u32 %v687, 7
          %v689 = vsub.s32 7, %v688
          %v690 = vrot.slane %v386, %v689
          %v691 = vmul.f32 %v690, %v679
          %v692 = vmul.f32 %v690, %v680
          %v693 = vmul.f32 %v690, %v681
          %v694 = vmul.f32 %v690, %v682
          %v695 = vmul.f32 %v690, %v683
          %v696 = vmul.f32 %v690, %v684
          %v697 = vmul.f32 %v690, %v685
          %v698 = vmul.f32 %v690, %v686
          %v699 = vadd.f32 %v659, %v691
          %v700 = vadd.f32 %v660, %v692
          %v701 = vadd.f32 %v661, %v693
          %v702 = vadd.f32 %v662, %v694
          %v703 = vadd.f32 %v663, %v695
          %v704 = vadd.f32 %v664, %v696
          %v705 = vadd.f32 %v665, %v697
          %v706 = vadd.f32 %v666, %v698
        $region53: #{_nonlinear_forward.1} parent=39 // loop_footer
          %s373 = sadd.s32 1, %s369
        $region54: #{_nonlinear_forward.1} parent=39 // loop_footer_branch
          %368 = sbr.rel target = $region50
        $region55: #{_nonlinear_forward.1} parent=39 // loop_exit
          _
        %707 = vst [vmem:[%s313] sm:$0xff] %v374
        %708 = vst [vmem:[%s313 + $0x8] sm:$0xff] %v375
        %709 = vst [vmem:[%s313 + $0x10] sm:$0xff] %v376
        %710 = vst [vmem:[%s313 + $0x18] sm:$0xff] %v377
        %711 = vst [vmem:[%s313 + $0x20] sm:$0xff] %v378
        %712 = vst [vmem:[%s313 + $0x28] sm:$0xff] %v379
        %713 = vst [vmem:[%s313 + $0x30] sm:$0xff] %v380
        %714 = vst [vmem:[%s313 + $0x38] sm:$0xff] %v381
        %v715 = vld [vmem:[%s307] sm:$0xff]
        %v716 = vld [vmem:[%s307 + $0x8] sm:$0xff]
        %v717 = vld [vmem:[%s307 + $0x10] sm:$0xff]
        %v718 = vld [vmem:[%s307 + $0x18] sm:$0xff]
        %v719 = vld [vmem:[%s307 + $0x20] sm:$0xff]
        %v720 = vld [vmem:[%s307 + $0x28] sm:$0xff]
        %v721 = vld [vmem:[%s307 + $0x30] sm:$0xff]
        %v722 = vld [vmem:[%s307 + $0x38] sm:$0xff]
        %v723 = vsub.f32 %v715, %v335
        %v724 = vsub.f32 %v716, %v335
        %v725 = vsub.f32 %v717, %v335
        %v726 = vsub.f32 %v718, %v335
        %v727 = vsub.f32 %v719, %v335
        %v728 = vsub.f32 %v720, %v335
        %v729 = vsub.f32 %v721, %v335
        %v730 = vsub.f32 %v722, %v335
        %v731 = vmul.f32 %v347, %v723
        %v732 = vmul.f32 %v347, %v724
        %v733 = vmul.f32 %v347, %v725
        %v734 = vmul.f32 %v347, %v726
        %v735 = vmul.f32 %v347, %v727
        %v736 = vmul.f32 %v347, %v728
        %v737 = vmul.f32 %v347, %v729
        %v738 = vmul.f32 %v347, %v730
        %v739 = vadd.f32 %v359, %v731
        %v740 = vadd.f32 %v359, %v732
        %v741 = vadd.f32 %v359, %v733
        %v742 = vadd.f32 %v359, %v734
        %v743 = vadd.f32 %v359, %v735
        %v744 = vadd.f32 %v359, %v736
        %v745 = vadd.f32 %v359, %v737
        %v746 = vadd.f32 %v359, %v738
        loop: start=0, step=1, limit=13
        $region56: #{_nonlinear_forward.1} parent=39 // loop_pre_header
          _
        $region57: #{_nonlinear_forward.1} parent=39 // loop_header
          %s748 = sphi 0, %s752
          %p749 = scmp.ge.s32.totalorder %s748, 13
          %v753 = vphi %v739, %v1078
          %v754 = vphi %v740, %v1079
          %v755 = vphi %v741, %v1080
          %v756 = vphi %v742, %v1081
          %v757 = vphi %v743, %v1082
          %v758 = vphi %v744, %v1083
          %v759 = vphi %v745, %v1084
          %v760 = vphi %v746, %v1085
        $region58: #{_nonlinear_forward.1} parent=39 // loop_header_branch
          %751 = sbr.rel (%p749) target = $region62
        $region59: #{_nonlinear_forward.1} parent=39 // loop_body
          %s761 = smul.u32 %s748, 8
          %s762 = scalar_lea.vmem [#allocation2], %s761
          %v763 = vld [vmem:[%s762] sm:$0xff]
          %s764 = scalar_lea.vmem [#allocation4], %s761
          %v765 = vld [vmem:[%s764] sm:$0xff]
          %v766 = vlaneseq
          %v767 = vshrl.u32 %v766, 7
          %v768 = vsub.s32 0, %v767
          %v769 = vrot.slane %v763, %v768
          %v770 = vsub.f32 %v715, %v769
          %v771 = vsub.f32 %v716, %v769
          %v772 = vsub.f32 %v717, %v769
          %v773 = vsub.f32 %v718, %v769
          %v774 = vsub.f32 %v719, %v769
          %v775 = vsub.f32 %v720, %v769
          %v776 = vsub.f32 %v721, %v769
          %v777 = vsub.f32 %v722, %v769
          %v778 = vmax.f32 %v770, 0.0
          %v779 = vmax.f32 %v771, 0.0
          %v780 = vmax.f32 %v772, 0.0
          %v781 = vmax.f32 %v773, 0.0
          %v782 = vmax.f32 %v774, 0.0
          %v783 = vmax.f32 %v775, 0.0
          %v784 = vmax.f32 %v776, 0.0
          %v785 = vmax.f32 %v777, 0.0
          %v786 = vlaneseq
          %v787 = vshrl.u32 %v786, 7
          %v788 = vsub.s32 0, %v787
          %v789 = vrot.slane %v765, %v788
          %v790 = vmul.f32 %v789, %v778
          %v791 = vmul.f32 %v789, %v779
          %v792 = vmul.f32 %v789, %v780
          %v793 = vmul.f32 %v789, %v781
          %v794 = vmul.f32 %v789, %v782
          %v795 = vmul.f32 %v789, %v783
          %v796 = vmul.f32 %v789, %v784
          %v797 = vmul.f32 %v789, %v785
          %v798 = vadd.f32 %v753, %v790
          %v799 = vadd.f32 %v754, %v791
          %v800 = vadd.f32 %v755, %v792
          %v801 = vadd.f32 %v756, %v793
          %v802 = vadd.f32 %v757, %v794
          %v803 = vadd.f32 %v758, %v795
          %v804 = vadd.f32 %v759, %v796
          %v805 = vadd.f32 %v760, %v797
          %v806 = vlaneseq
          %v807 = vshrl.u32 %v806, 7
          %v808 = vsub.s32 1, %v807
          %v809 = vrot.slane %v763, %v808
          %v810 = vsub.f32 %v715, %v809
          %v811 = vsub.f32 %v716, %v809
          %v812 = vsub.f32 %v717, %v809
          %v813 = vsub.f32 %v718, %v809
          %v814 = vsub.f32 %v719, %v809
          %v815 = vsub.f32 %v720, %v809
          %v816 = vsub.f32 %v721, %v809
          %v817 = vsub.f32 %v722, %v809
          %v818 = vmax.f32 %v810, 0.0
          %v819 = vmax.f32 %v811, 0.0
          %v820 = vmax.f32 %v812, 0.0
          %v821 = vmax.f32 %v813, 0.0
          %v822 = vmax.f32 %v814, 0.0
          %v823 = vmax.f32 %v815, 0.0
          %v824 = vmax.f32 %v816, 0.0
          %v825 = vmax.f32 %v817, 0.0
          %v826 = vlaneseq
          %v827 = vshrl.u32 %v826, 7
          %v828 = vsub.s32 1, %v827
          %v829 = vrot.slane %v765, %v828
          %v830 = vmul.f32 %v829, %v818
          %v831 = vmul.f32 %v829, %v819
          %v832 = vmul.f32 %v829, %v820
          %v833 = vmul.f32 %v829, %v821
          %v834 = vmul.f32 %v829, %v822
          %v835 = vmul.f32 %v829, %v823
          %v836 = vmul.f32 %v829, %v824
          %v837 = vmul.f32 %v829, %v825
          %v838 = vadd.f32 %v798, %v830
          %v839 = vadd.f32 %v799, %v831
          %v840 = vadd.f32 %v800, %v832
          %v841 = vadd.f32 %v801, %v833
          %v842 = vadd.f32 %v802, %v834
          %v843 = vadd.f32 %v803, %v835
          %v844 = vadd.f32 %v804, %v836
          %v845 = vadd.f32 %v805, %v837
          %v846 = vlaneseq
          %v847 = vshrl.u32 %v846, 7
          %v848 = vsub.s32 2, %v847
          %v849 = vrot.slane %v763, %v848
          %v850 = vsub.f32 %v715, %v849
          %v851 = vsub.f32 %v716, %v849
          %v852 = vsub.f32 %v717, %v849
          %v853 = vsub.f32 %v718, %v849
          %v854 = vsub.f32 %v719, %v849
          %v855 = vsub.f32 %v720, %v849
          %v856 = vsub.f32 %v721, %v849
          %v857 = vsub.f32 %v722, %v849
          %v858 = vmax.f32 %v850, 0.0
          %v859 = vmax.f32 %v851, 0.0
          %v860 = vmax.f32 %v852, 0.0
          %v861 = vmax.f32 %v853, 0.0
          %v862 = vmax.f32 %v854, 0.0
          %v863 = vmax.f32 %v855, 0.0
          %v864 = vmax.f32 %v856, 0.0
          %v865 = vmax.f32 %v857, 0.0
          %v866 = vlaneseq
          %v867 = vshrl.u32 %v866, 7
          %v868 = vsub.s32 2, %v867
          %v869 = vrot.slane %v765, %v868
          %v870 = vmul.f32 %v869, %v858
          %v871 = vmul.f32 %v869, %v859
          %v872 = vmul.f32 %v869, %v860
          %v873 = vmul.f32 %v869, %v861
          %v874 = vmul.f32 %v869, %v862
          %v875 = vmul.f32 %v869, %v863
          %v876 = vmul.f32 %v869, %v864
          %v877 = vmul.f32 %v869, %v865
          %v878 = vadd.f32 %v838, %v870
          %v879 = vadd.f32 %v839, %v871
          %v880 = vadd.f32 %v840, %v872
          %v881 = vadd.f32 %v841, %v873
          %v882 = vadd.f32 %v842, %v874
          %v883 = vadd.f32 %v843, %v875
          %v884 = vadd.f32 %v844, %v876
          %v885 = vadd.f32 %v845, %v877
          %v886 = vlaneseq
          %v887 = vshrl.u32 %v886, 7
          %v888 = vsub.s32 3, %v887
          %v889 = vrot.slane %v763, %v888
          %v890 = vsub.f32 %v715, %v889
          %v891 = vsub.f32 %v716, %v889
          %v892 = vsub.f32 %v717, %v889
          %v893 = vsub.f32 %v718, %v889
          %v894 = vsub.f32 %v719, %v889
          %v895 = vsub.f32 %v720, %v889
          %v896 = vsub.f32 %v721, %v889
          %v897 = vsub.f32 %v722, %v889
          %v898 = vmax.f32 %v890, 0.0
          %v899 = vmax.f32 %v891, 0.0
          %v900 = vmax.f32 %v892, 0.0
          %v901 = vmax.f32 %v893, 0.0
          %v902 = vmax.f32 %v894, 0.0
          %v903 = vmax.f32 %v895, 0.0
          %v904 = vmax.f32 %v896, 0.0
          %v905 = vmax.f32 %v897, 0.0
          %v906 = vlaneseq
          %v907 = vshrl.u32 %v906, 7
          %v908 = vsub.s32 3, %v907
          %v909 = vrot.slane %v765, %v908
          %v910 = vmul.f32 %v909, %v898
          %v911 = vmul.f32 %v909, %v899
          %v912 = vmul.f32 %v909, %v900
          %v913 = vmul.f32 %v909, %v901
          %v914 = vmul.f32 %v909, %v902
          %v915 = vmul.f32 %v909, %v903
          %v916 = vmul.f32 %v909, %v904
          %v917 = vmul.f32 %v909, %v905
          %v918 = vadd.f32 %v878, %v910
          %v919 = vadd.f32 %v879, %v911
          %v920 = vadd.f32 %v880, %v912
          %v921 = vadd.f32 %v881, %v913
          %v922 = vadd.f32 %v882, %v914
          %v923 = vadd.f32 %v883, %v915
          %v924 = vadd.f32 %v884, %v916
          %v925 = vadd.f32 %v885, %v917
          %v926 = vlaneseq
          %v927 = vshrl.u32 %v926, 7
          %v928 = vsub.s32 4, %v927
          %v929 = vrot.slane %v763, %v928
          %v930 = vsub.f32 %v715, %v929
          %v931 = vsub.f32 %v716, %v929
          %v932 = vsub.f32 %v717, %v929
          %v933 = vsub.f32 %v718, %v929
          %v934 = vsub.f32 %v719, %v929
          %v935 = vsub.f32 %v720, %v929
          %v936 = vsub.f32 %v721, %v929
          %v937 = vsub.f32 %v722, %v929
          %v938 = vmax.f32 %v930, 0.0
          %v939 = vmax.f32 %v931, 0.0
          %v940 = vmax.f32 %v932, 0.0
          %v941 = vmax.f32 %v933, 0.0
          %v942 = vmax.f32 %v934, 0.0
          %v943 = vmax.f32 %v935, 0.0
          %v944 = vmax.f32 %v936, 0.0
          %v945 = vmax.f32 %v937, 0.0
          %v946 = vlaneseq
          %v947 = vshrl.u32 %v946, 7
          %v948 = vsub.s32 4, %v947
          %v949 = vrot.slane %v765, %v948
          %v950 = vmul.f32 %v949, %v938
          %v951 = vmul.f32 %v949, %v939
          %v952 = vmul.f32 %v949, %v940
          %v953 = vmul.f32 %v949, %v941
          %v954 = vmul.f32 %v949, %v942
          %v955 = vmul.f32 %v949, %v943
          %v956 = vmul.f32 %v949, %v944
          %v957 = vmul.f32 %v949, %v945
          %v958 = vadd.f32 %v918, %v950
          %v959 = vadd.f32 %v919, %v951
          %v960 = vadd.f32 %v920, %v952
          %v961 = vadd.f32 %v921, %v953
          %v962 = vadd.f32 %v922, %v954
          %v963 = vadd.f32 %v923, %v955
          %v964 = vadd.f32 %v924, %v956
          %v965 = vadd.f32 %v925, %v957
          %v966 = vlaneseq
          %v967 = vshrl.u32 %v966, 7
          %v968 = vsub.s32 5, %v967
          %v969 = vrot.slane %v763, %v968
          %v970 = vsub.f32 %v715, %v969
          %v971 = vsub.f32 %v716, %v969
          %v972 = vsub.f32 %v717, %v969
          %v973 = vsub.f32 %v718, %v969
          %v974 = vsub.f32 %v719, %v969
          %v975 = vsub.f32 %v720, %v969
          %v976 = vsub.f32 %v721, %v969
          %v977 = vsub.f32 %v722, %v969
          %v978 = vmax.f32 %v970, 0.0
          %v979 = vmax.f32 %v971, 0.0
          %v980 = vmax.f32 %v972, 0.0
          %v981 = vmax.f32 %v973, 0.0
          %v982 = vmax.f32 %v974, 0.0
          %v983 = vmax.f32 %v975, 0.0
          %v984 = vmax.f32 %v976, 0.0
          %v985 = vmax.f32 %v977, 0.0
          %v986 = vlaneseq
          %v987 = vshrl.u32 %v986, 7
          %v988 = vsub.s32 5, %v987
          %v989 = vrot.slane %v765, %v988
          %v990 = vmul.f32 %v989, %v978
          %v991 = vmul.f32 %v989, %v979
          %v992 = vmul.f32 %v989, %v980
          %v993 = vmul.f32 %v989, %v981
          %v994 = vmul.f32 %v989, %v982
          %v995 = vmul.f32 %v989, %v983
          %v996 = vmul.f32 %v989, %v984
          %v997 = vmul.f32 %v989, %v985
          %v998 = vadd.f32 %v958, %v990
          %v999 = vadd.f32 %v959, %v991
          %v1000 = vadd.f32 %v960, %v992
          %v1001 = vadd.f32 %v961, %v993
          %v1002 = vadd.f32 %v962, %v994
          %v1003 = vadd.f32 %v963, %v995
          %v1004 = vadd.f32 %v964, %v996
          %v1005 = vadd.f32 %v965, %v997
          %v1006 = vlaneseq
          %v1007 = vshrl.u32 %v1006, 7
          %v1008 = vsub.s32 6, %v1007
          %v1009 = vrot.slane %v763, %v1008
          %v1010 = vsub.f32 %v715, %v1009
          %v1011 = vsub.f32 %v716, %v1009
          %v1012 = vsub.f32 %v717, %v1009
          %v1013 = vsub.f32 %v718, %v1009
          %v1014 = vsub.f32 %v719, %v1009
          %v1015 = vsub.f32 %v720, %v1009
          %v1016 = vsub.f32 %v721, %v1009
          %v1017 = vsub.f32 %v722, %v1009
          %v1018 = vmax.f32 %v1010, 0.0
          %v1019 = vmax.f32 %v1011, 0.0
          %v1020 = vmax.f32 %v1012, 0.0
          %v1021 = vmax.f32 %v1013, 0.0
          %v1022 = vmax.f32 %v1014, 0.0
          %v1023 = vmax.f32 %v1015, 0.0
          %v1024 = vmax.f32 %v1016, 0.0
          %v1025 = vmax.f32 %v1017, 0.0
          %v1026 = vlaneseq
          %v1027 = vshrl.u32 %v1026, 7
          %v1028 = vsub.s32 6, %v1027
          %v1029 = vrot.slane %v765, %v1028
          %v1030 = vmul.f32 %v1029, %v1018
          %v1031 = vmul.f32 %v1029, %v1019
          %v1032 = vmul.f32 %v1029, %v1020
          %v1033 = vmul.f32 %v1029, %v1021
          %v1034 = vmul.f32 %v1029, %v1022
          %v1035 = vmul.f32 %v1029, %v1023
          %v1036 = vmul.f32 %v1029, %v1024
          %v1037 = vmul.f32 %v1029, %v1025
          %v1038 = vadd.f32 %v998, %v1030
          %v1039 = vadd.f32 %v999, %v1031
          %v1040 = vadd.f32 %v1000, %v1032
          %v1041 = vadd.f32 %v1001, %v1033
          %v1042 = vadd.f32 %v1002, %v1034
          %v1043 = vadd.f32 %v1003, %v1035
          %v1044 = vadd.f32 %v1004, %v1036
          %v1045 = vadd.f32 %v1005, %v1037
          %v1046 = vlaneseq
          %v1047 = vshrl.u32 %v1046, 7
          %v1048 = vsub.s32 7, %v1047
          %v1049 = vrot.slane %v763, %v1048
          %v1050 = vsub.f32 %v715, %v1049
          %v1051 = vsub.f32 %v716, %v1049
          %v1052 = vsub.f32 %v717, %v1049
          %v1053 = vsub.f32 %v718, %v1049
          %v1054 = vsub.f32 %v719, %v1049
          %v1055 = vsub.f32 %v720, %v1049
          %v1056 = vsub.f32 %v721, %v1049
          %v1057 = vsub.f32 %v722, %v1049
          %v1058 = vmax.f32 %v1050, 0.0
          %v1059 = vmax.f32 %v1051, 0.0
          %v1060 = vmax.f32 %v1052, 0.0
          %v1061 = vmax.f32 %v1053, 0.0
          %v1062 = vmax.f32 %v1054, 0.0
          %v1063 = vmax.f32 %v1055, 0.0
          %v1064 = vmax.f32 %v1056, 0.0
          %v1065 = vmax.f32 %v1057, 0.0
          %v1066 = vlaneseq
          %v1067 = vshrl.u32 %v1066, 7
          %v1068 = vsub.s32 7, %v1067
          %v1069 = vrot.slane %v765, %v1068
          %v1070 = vmul.f32 %v1069, %v1058
          %v1071 = vmul.f32 %v1069, %v1059
          %v1072 = vmul.f32 %v1069, %v1060
          %v1073 = vmul.f32 %v1069, %v1061
          %v1074 = vmul.f32 %v1069, %v1062
          %v1075 = vmul.f32 %v1069, %v1063
          %v1076 = vmul.f32 %v1069, %v1064
          %v1077 = vmul.f32 %v1069, %v1065
          %v1078 = vadd.f32 %v1038, %v1070
          %v1079 = vadd.f32 %v1039, %v1071
          %v1080 = vadd.f32 %v1040, %v1072
          %v1081 = vadd.f32 %v1041, %v1073
          %v1082 = vadd.f32 %v1042, %v1074
          %v1083 = vadd.f32 %v1043, %v1075
          %v1084 = vadd.f32 %v1044, %v1076
          %v1085 = vadd.f32 %v1045, %v1077
        $region60: #{_nonlinear_forward.1} parent=39 // loop_footer
          %s752 = sadd.s32 1, %s748
        $region61: #{_nonlinear_forward.1} parent=39 // loop_footer_branch
          %747 = sbr.rel target = $region57
        $region62: #{_nonlinear_forward.1} parent=39 // loop_exit
          _
        %1086 = vst [vmem:[%s319] sm:$0xff] %v753
        %1087 = vst [vmem:[%s319 + $0x8] sm:$0xff] %v754
        %1088 = vst [vmem:[%s319 + $0x10] sm:$0xff] %v755
        %1089 = vst [vmem:[%s319 + $0x18] sm:$0xff] %v756
        %1090 = vst [vmem:[%s319 + $0x20] sm:$0xff] %v757
        %1091 = vst [vmem:[%s319 + $0x28] sm:$0xff] %v758
        %1092 = vst [vmem:[%s319 + $0x30] sm:$0xff] %v759
        %1093 = vst [vmem:[%s319 + $0x38] sm:$0xff] %v760
        %s1094 = smul.u32 8, %s20
        %p1095 = scmp.lt.s32.totalorder %s1094, 15
        %s1096 = scalar_select %p1095, %s1094, 15
        %s1097 = smul.addr %s1096, 8
        %s1098 = scalar_lea.vmem %s5, %s1097
        %s1099 = smul.u32 8, %s20
        %p1100 = scmp.lt.s32.totalorder %s1099, 15
        %s1101 = scalar_select %p1100, %s1099, 15
        %s1102 = smul.addr %s1101, 8
        %s1103 = scalar_lea.vmem %s6, %s1102
        // Predicated region
        $region63: #{_nonlinear_forward.1} parent=39 // pred_check
          %p1104 = pneg %p153
        $region64: #{_nonlinear_forward.1} parent=39 // pred_check_branch
          %1106 = sbr.rel (%p1104) target = $region66
        $region65: #{_nonlinear_forward.1} parent=39 // pred_region
          %s1107 = smul.u32 8, %s20
        $region66: #{_nonlinear_forward.1} parent=39 // pred_fallthru
          _
        // Predicated region
        $region67: #{_nonlinear_forward.1} parent=39 // pred_check
          %p1108 = pneg %p179
        $region68: #{_nonlinear_forward.1} parent=39 // pred_check_branch
          %1110 = sbr.rel (%p1108) target = $region70
        $region69: #{_nonlinear_forward.1} parent=39 // pred_region
          %s1111 = smul.u32 8, %s20
        $region70: #{_nonlinear_forward.1} parent=39 // pred_fallthru
          _
      $region40: #{_nonlinear_forward.1} parent=5 // pred_fallthru
        _
      %p1112 = scmp.le.s32.totalorder 2, %s15
      // Predicated region
      $region71: #{_nonlinear_forward.1} parent=5 // pred_check
        %p1113 = pneg %p1112
      $region72: #{_nonlinear_forward.1} parent=5 // pred_check_branch
        %1115 = sbr.rel (%p1113) target = $region74
      $region73: #{_nonlinear_forward.1} parent=5 // pred_region
        %s1116 = ssub.s32 %s15, 2
        // Predicated region
        $region75: #{_nonlinear_forward.1} parent=73 // pred_check
          %p1117 = pneg %p159
        $region76: #{_nonlinear_forward.1} parent=73 // pred_check_branch
          %1119 = sbr.rel (%p1117) target = $region78
        $region77: #{_nonlinear_forward.1} parent=73 // pred_region
          %s1120 = smul.u32 8, %s21
          %p1121 = scmp.lt.s32.totalorder %s1120, 15
          %s1122 = scalar_select %p1121, %s1120, 15
          %s1123 = smul.addr %s1122, 8
          %s1124 = scalar_lea.vmem %s5, %s1123
        $region78: #{_nonlinear_forward.1} parent=73 // pred_fallthru
          _
        // Predicated region
        $region79: #{_nonlinear_forward.1} parent=73 // pred_check
          %p1125 = pneg %p185
        $region80: #{_nonlinear_forward.1} parent=73 // pred_check_branch
          %1127 = sbr.rel (%p1125) target = $region82
        $region81: #{_nonlinear_forward.1} parent=73 // pred_region
          %s1128 = smul.u32 8, %s21
          %p1129 = scmp.lt.s32.totalorder %s1128, 15
          %s1130 = scalar_select %p1129, %s1128, 15
          %s1131 = smul.addr %s1130, 8
          %s1132 = scalar_lea.vmem %s6, %s1131
        $region82: #{_nonlinear_forward.1} parent=73 // pred_fallthru
          _
      $region74: #{_nonlinear_forward.1} parent=5 // pred_fallthru
        _
    $region6: #{_nonlinear_forward.1} parent=1 // loop_footer
      %s19 = sadd.s32 1, %s15
    $region7: #{_nonlinear_forward.1} parent=1 // loop_footer_branch
      %14 = sbr.rel target = $region3
    $region8: #{_nonlinear_forward.1} parent=1 // loop_exit
      _
    %1133 = vsyncpa [#allocation3], 1
    %s1134 = scalar_lea.sflag [#allocation3], 1
    %1135 = vsyncpa %s1134, 1
    %1136 = vsyncpa [#allocation5], 1

</llo_original>
